<compile_context>
chip_gen: v7x
topology: tpu7x:2x2x1
jax: 0.10.0
libtpu: 0.0.40
codegen_flags: <defaults>
</compile_context>

<pallas_src>
import jax
import jax.numpy as jnp
from jax.experimental import pallas as pl
from jax.experimental.pallas import tpu as pltpu

EPS = 1e-5
NEG_SLOPE = 0.2


def resblock_kernel(x_ref, ab_ref, w1_ref, b1_ref, w2_ref, b2_ref, w3_ref, b3_ref,
                    o_ref, acc_ref):
    bn, C, L = x_ref.shape
    inv_l = jnp.float32(1.0 / L)

    # Broadcast weights (constant index_map -> fetched once per step).
    w1 = w1_ref[...].astype(jnp.float32)        # (C, C)      1x1 conv
    b1 = b1_ref[...].astype(jnp.float32)        # (C, 1)
    w2 = w2_ref[...].astype(jnp.float32)        # (C, 3C)     tap-fused k=3 conv
    b2 = b2_ref[...].astype(jnp.float32)
    w3 = w3_ref[...].astype(jnp.float32)        # (C, 3C)
    b3 = b3_ref[...].astype(jnp.float32)

    # Hoisted boundary masks, computed ONCE and reused by both k=3 convs and all batches.
    col = jax.lax.broadcasted_iota(jnp.int32, (C, L), 1)
    not_first = col >= 1           # valid "l-1" positions
    not_last = col <= L - 2        # valid "l+1" positions

    def instance_norm(t):
        # Fused single-pass stats in f32; biased variance (matches InstanceNorm1d),
        # clamped to avoid E[x^2]-mean^2 cancellation going negative.
        mean = jnp.sum(t, axis=-1, keepdims=True) * inv_l
        msq = jnp.sum(t * t, axis=-1, keepdims=True) * inv_l
        var = jnp.maximum(msq - mean * mean, 0.0)
        return (t - mean) * jax.lax.rsqrt(var + EPS)

    def leaky_relu(t):
        return jnp.where(t >= 0, t, NEG_SLOPE * t)

    def conv_k3(t, w_fused, b):
        # Conv1d(kernel_size=3, padding=1) as ONE MXU matmul: stack the three shifted
        # taps along the contraction dim -> (3C, L), then (C, 3C) x (3C, L).
        t_m1 = jnp.where(not_first, pltpu.roll(t, 1, 1), 0.0)        # t[:, l-1], zero at l=0
        t_p1 = jnp.where(not_last, pltpu.roll(t, L - 1, 1), 0.0)     # t[:, l+1], zero at l=L-1
        stacked = jnp.concatenate([t_m1, t, t_p1], axis=0)           # (3C, L)
        return jnp.dot(w_fused, stacked, preferred_element_type=jnp.float32) + b

    def one_batch(b, carry):
        x = x_ref[b].astype(jnp.float32)         # (C, L)
        ab = ab_ref[b].astype(jnp.float32)       # (4, C, 1)  alpha1, beta1, alpha2, beta2
        alpha1, beta1, alpha2, beta2 = ab[0], ab[1], ab[2], ab[3]

        p1 = alpha1 * instance_norm(x) + beta1                                   # CIN 1
        # Residual branch -> VMEM scratch so it is not live (in vregs) across the k=3 chain.
        acc_ref[...] = jnp.dot(w1, p1, preferred_element_type=jnp.float32) + b1  # 1x1 conv
        a1 = leaky_relu(p1)
        p2 = alpha2 * instance_norm(a1) + beta2                                  # CIN 2
        a2 = leaky_relu(conv_k3(p2, w2, b2))                                     # conv2 + lrelu
        conv3_out = conv_k3(a2, w3, b3)                                          # conv3
        o_ref[b] = (conv3_out + acc_ref[...]).astype(o_ref.dtype)
        return carry

    jax.lax.fori_loop(0, bn, one_batch, None, unroll=True)


def conditional_resblock_forward(x, z, p, *, block_n=None):
    N, C, L = x.shape
    # The PyTorch module only works when in_channels == out_channels
    # (alpha.expand_as(out) in CIN2 requires matching channel counts).
    assert p["w1"].shape[0] == p["w1"].shape[1] == C

    hi = jax.lax.Precision.HIGHEST

    # Hoist the four 1x1 "conv" (alpha/beta for CIN1 and CIN2) into ONE fused matmul.
    z2 = z[:, :, 0]                                                               # (N, Z)
    w_ab = jnp.concatenate([p["wa1"], p["wb1"], p["wa2"], p["wb2"]], axis=0)      # (4C, Z)
    b_ab = jnp.concatenate([p["ba1"], p["bb1"], p["ba2"], p["bb2"]], axis=0)      # (4C,)
    ab = (jnp.einsum("nz,cz->nc", z2, w_ab, precision=hi) + b_ab).reshape(N, 4, C, 1)

    # Weight layouts: 1x1 conv as (C, C); k=3 convs tap-fused to (C_out, 3*C_in)
    # with index [o, k*C + i] = w[o, i, k] (matches the [t_m1; t; t_p1] stacking).
    w1 = p["w1"][:, :, 0]                                       # (C, C)
    w2 = jnp.transpose(p["w2"], (0, 2, 1)).reshape(C, 3 * C)    # (C, 3C)
    w3 = jnp.transpose(p["w3"], (0, 2, 1)).reshape(C, 3 * C)
    b1 = p["b1"].reshape(C, 1)
    b2 = p["b2"].reshape(C, 1)
    b3 = p["b3"].reshape(C, 1)

    # Multiple batches per grid step (amortizes ~0.35us per-step overhead, bigger DMAs).
    # Keep the "parallel" grid axis length >= 2 when N allows it (v7x megacore).
    if block_n is None:
        block_n = max(1, N // 2)
    bn = max(1, min(block_n, N))
    while N % bn != 0:       # exact blocks: InstanceNorm must never see padded rows
        bn -= 1
    grid_n = N // bn

    # VMEM budget: double-buffered x/out blocks + double-buffered weights + ~8 live
    # f32 (C, L) slabs per in-flight batch.  Cap at 48 MiB so v7x (64 MiB physical)
    # keeps headroom; never request below the 32 MiB scoped default.
    slab_f32 = C * L * 4
    weight_bytes = 4 * (C * C + 2 * C * 3 * C + 3 * C)
    est = (4 * bn + 10) * slab_f32 + 2 * (weight_bytes + bn * 4 * C * 4)
    vmem_limit = min(48 * 1024 * 1024, max(2 * est, 32 * 1024 * 1024))

    return pl.pallas_call(
        resblock_kernel,
        out_shape=jax.ShapeDtypeStruct((N, C, L), x.dtype),
        grid_spec=pltpu.PrefetchScalarGridSpec(
            num_scalar_prefetch=0,
            grid=(grid_n,),
            in_specs=[
                pl.BlockSpec((bn, C, L), lambda n: (n, 0, 0)),          # x          (per batch block)
                pl.BlockSpec((bn, 4, C, 1), lambda n: (n, 0, 0, 0)),    # alpha/beta (per batch block)
                pl.BlockSpec((C, C), lambda n: (0, 0)),                 # w1 (broadcast)
                pl.BlockSpec((C, 1), lambda n: (0, 0)),                 # b1
                pl.BlockSpec((C, 3 * C), lambda n: (0, 0)),             # w2 (tap-fused)
                pl.BlockSpec((C, 1), lambda n: (0, 0)),                 # b2
                pl.BlockSpec((C, 3 * C), lambda n: (0, 0)),             # w3 (tap-fused)
                pl.BlockSpec((C, 1), lambda n: (0, 0)),                 # b3
            ],
            out_specs=pl.BlockSpec((bn, C, L), lambda n: (n, 0, 0)),
            scratch_shapes=[pltpu.VMEM((C, L), jnp.float32)],           # residual accumulator
        ),
        compiler_params=pltpu.CompilerParams(
            dimension_semantics=("parallel",),
            vmem_limit_bytes=vmem_limit,
        ),
    )(x, ab, w1, b1, w2, b2, w3, b3)


def resblock_reference(x, z, p):
    hi = jax.lax.Precision.HIGHEST
    z2 = z[:, :, 0]

    def cin(t, wa, ba, wb, bb):
        mean = jnp.mean(t, axis=-1, keepdims=True)
        var = jnp.mean((t - mean) ** 2, axis=-1, keepdims=True)
        normed = (t - mean) / jnp.sqrt(var + EPS)
        alpha = (jnp.einsum("cz,nz->nc", wa, z2, precision=hi) + ba)[:, :, None]
        beta = (jnp.einsum("cz,nz->nc", wb, z2, precision=hi) + bb)[:, :, None]
        return alpha * normed + beta

    def conv_k1(t, w, b):
        return jnp.einsum("oi,nil->nol", w[:, :, 0], t, precision=hi) + b[None, :, None]

    def conv_k3(t, w, b):
        tp = jnp.pad(t, ((0, 0), (0, 0), (1, 1)))
        y = (jnp.einsum("oi,nil->nol", w[:, :, 0], tp[:, :, :-2], precision=hi)
             + jnp.einsum("oi,nil->nol", w[:, :, 1], tp[:, :, 1:-1], precision=hi)
             + jnp.einsum("oi,nil->nol", w[:, :, 2], tp[:, :, 2:], precision=hi))
        return y + b[None, :, None]

    def lrelu(t):
        return jnp.where(t >= 0, t, NEG_SLOPE * t)

    p1 = cin(x, p["wa1"], p["ba1"], p["wb1"], p["bb1"])
    c1 = conv_k1(p1, p["w1"], p["b1"])
    a1 = lrelu(p1)
    p2 = cin(a1, p["wa2"], p["ba2"], p["wb2"], p["bb2"])
    c2 = conv_k3(p2, p["w2"], p["b2"])
    a2 = lrelu(c2)
    c3 = conv_k3(a2, p["w3"], p["b3"])
    return c3 + c1


if __name__ == "__main__":
    # in_channels == out_channels (required by the module's CIN2/expand_as).
    # C multiple of 8 (sublane-full), L multiple of 128 (lane-dense stores).
    # N=4 with BN=2 per grid step -> grid length 2 (megacore-friendly).
    N, C, L, Z = 4, 8, 128, 8

    key = jax.random.PRNGKey(0)
    ks = jax.random.split(key, 18)

    def mk(k, shape, scale=0.1):
        return jax.random.normal(k, shape, dtype=jnp.float32) * scale

    x = jax.random.normal(ks[0], (N, C, L), dtype=jnp.float32)
    z = jax.random.normal(ks[1], (N, Z, 1), dtype=jnp.float32)

    params = {
        # CIN1: Conv1d(Z -> C, k=1) weights stored as (C, Z), biases (C,)
        "wa1": mk(ks[2], (C, Z)), "ba1": mk(ks[3], (C,)),
        "wb1": mk(ks[4], (C, Z)), "bb1": mk(ks[5], (C,)),
        # CIN2
        "wa2": mk(ks[6], (C, Z)), "ba2": mk(ks[7], (C,)),
        "wb2": mk(ks[8], (C, Z)), "bb2": mk(ks[9], (C,)),
        # conv1 (k=1), conv2/conv3 (k=3, pad=1) in PyTorch (C_out, C_in, K) layout
        "w1": mk(ks[10], (C, C, 1)), "b1": mk(ks[11], (C,)),
        "w2": mk(ks[12], (C, C, 3)), "b2": mk(ks[13], (C,)),
        "w3": mk(ks[14], (C, C, 3)), "b3": mk(ks[15], (C,)),
    }

    y = conditional_resblock_forward(x, z, params)
    y = jax.block_until_ready(y)

    y_ref = resblock_reference(x, z, params)
    assert y.shape == (N, C, L)
    max_err = float(jnp.max(jnp.abs(y - y_ref)))
    assert jnp.allclose(y, y_ref, atol=1e-4, rtol=1e-4), f"mismatch vs reference, max|err|={max_err}"

    print("KERNEL_OK")
</pallas_src>

<mosaic_0001>
module attributes {stable_mosaic.version = 11 : i64} {
  func.func @resblock_kernel(%arg0: i32, %arg1: memref<2x8x128xf32, #tpu.memory_space<vmem>>, %arg2: memref<2x4x8x1xf32, #tpu.memory_space<vmem>>, %arg3: memref<8x8xf32, #tpu.memory_space<vmem>>, %arg4: memref<8x1xf32, #tpu.memory_space<vmem>>, %arg5: memref<8x24xf32, #tpu.memory_space<vmem>>, %arg6: memref<8x1xf32, #tpu.memory_space<vmem>>, %arg7: memref<8x24xf32, #tpu.memory_space<vmem>>, %arg8: memref<8x1xf32, #tpu.memory_space<vmem>>, %arg9: memref<2x8x128xf32, #tpu.memory_space<vmem>>, %arg10: memref<8x128xf32, #tpu.memory_space<vmem>>) attributes {dimension_semantics = [#tpu.dimension_semantics<parallel>], iteration_bounds = array<i64: 2>, scalar_prefetch = 0 : i64, scratch_operands = 1 : i64, tpu.core_type = #tpu.core_type<tc>, window_params = [{transform_indices = @transform_0, window_bounds = array<i64: 2, 8, 128>}, {transform_indices = @transform_1, window_bounds = array<i64: 2, 4, 8, 1>}, {pipeline_mode = #tpu.pipeline_mode<synchronous>, transform_indices = @transform_2, window_bounds = array<i64: 8, 8>}, {pipeline_mode = #tpu.pipeline_mode<synchronous>, transform_indices = @transform_3, window_bounds = array<i64: 8, 1>}, {pipeline_mode = #tpu.pipeline_mode<synchronous>, transform_indices = @transform_4, window_bounds = array<i64: 8, 24>}, {pipeline_mode = #tpu.pipeline_mode<synchronous>, transform_indices = @transform_5, window_bounds = array<i64: 8, 1>}, {pipeline_mode = #tpu.pipeline_mode<synchronous>, transform_indices = @transform_6, window_bounds = array<i64: 8, 24>}, {pipeline_mode = #tpu.pipeline_mode<synchronous>, transform_indices = @transform_7, window_bounds = array<i64: 8, 1>}, {transform_indices = @transform_8, window_bounds = array<i64: 2, 8, 128>}]} {
    %c0 = arith.constant 0 : index
    %c0_0 = arith.constant 0 : index
    %0 = vector.load %arg3[%c0, %c0_0] : memref<8x8xf32, #tpu.memory_space<vmem>>, vector<8x8xf32>
    %c0_1 = arith.constant 0 : index
    %c0_2 = arith.constant 0 : index
    %1 = vector.load %arg4[%c0_1, %c0_2] : memref<8x1xf32, #tpu.memory_space<vmem>>, vector<8x1xf32>
    %c0_3 = arith.constant 0 : index
    %c0_4 = arith.constant 0 : index
    %2 = vector.load %arg5[%c0_3, %c0_4] : memref<8x24xf32, #tpu.memory_space<vmem>>, vector<8x24xf32>
    %c0_5 = arith.constant 0 : index
    %c0_6 = arith.constant 0 : index
    %3 = vector.load %arg6[%c0_5, %c0_6] : memref<8x1xf32, #tpu.memory_space<vmem>>, vector<8x1xf32>
    %c0_7 = arith.constant 0 : index
    %c0_8 = arith.constant 0 : index
    %4 = vector.load %arg7[%c0_7, %c0_8] : memref<8x24xf32, #tpu.memory_space<vmem>>, vector<8x24xf32>
    %c0_9 = arith.constant 0 : index
    %c0_10 = arith.constant 0 : index
    %5 = vector.load %arg8[%c0_9, %c0_10] : memref<8x1xf32, #tpu.memory_space<vmem>>, vector<8x1xf32>
    %6 = tpu.iota {dimensions = array<i32: 1>} : vector<8x128xi32>
    %c1_i32 = arith.constant 1 : i32
    %7 = vector.broadcast %c1_i32 : i32 to vector<8x128xi32>
    %8 = arith.cmpi sge, %6, %7 : vector<8x128xi32>
    %c126_i32 = arith.constant 126 : i32
    %9 = vector.broadcast %c126_i32 : i32 to vector<8x128xi32>
    %10 = arith.cmpi sle, %6, %9 : vector<8x128xi32>
    %cst = arith.constant 7.812500e-03 : f32
    %c0_i32 = arith.constant 0 : i32
    %11 = arith.index_cast %c0_i32 : i32 to index
    %c0_11 = arith.constant 0 : index
    %c0_12 = arith.constant 0 : index
    %12 = vector.load %arg1[%11, %c0_11, %c0_12] : memref<2x8x128xf32, #tpu.memory_space<vmem>>, vector<1x8x128xf32>
    %13 = vector.shape_cast %12 : vector<1x8x128xf32> to vector<8x128xf32>
    %14 = arith.index_cast %c0_i32 : i32 to index
    %c0_13 = arith.constant 0 : index
    %c0_14 = arith.constant 0 : index
    %c0_15 = arith.constant 0 : index
    %15 = vector.load %arg2[%14, %c0_13, %c0_14, %c0_15] : memref<2x4x8x1xf32, #tpu.memory_space<vmem>>, vector<1x4x8x1xf32>
    %16 = vector.shape_cast %15 : vector<1x4x8x1xf32> to vector<4x8x1xf32>
    %17 = vector.extract_strided_slice %16 {offsets = [0, 0, 0], sizes = [1, 8, 1], strides = [1, 1, 1]} : vector<4x8x1xf32> to vector<1x8x1xf32>
    %18 = vector.shape_cast %17 : vector<1x8x1xf32> to vector<8x1xf32>
    %19 = vector.extract_strided_slice %16 {offsets = [1, 0, 0], sizes = [1, 8, 1], strides = [1, 1, 1]} : vector<4x8x1xf32> to vector<1x8x1xf32>
    %20 = vector.shape_cast %19 : vector<1x8x1xf32> to vector<8x1xf32>
    %21 = vector.extract_strided_slice %16 {offsets = [2, 0, 0], sizes = [1, 8, 1], strides = [1, 1, 1]} : vector<4x8x1xf32> to vector<1x8x1xf32>
    %22 = vector.shape_cast %21 : vector<1x8x1xf32> to vector<8x1xf32>
    %23 = vector.extract_strided_slice %16 {offsets = [3, 0, 0], sizes = [1, 8, 1], strides = [1, 1, 1]} : vector<4x8x1xf32> to vector<1x8x1xf32>
    %24 = vector.shape_cast %23 : vector<1x8x1xf32> to vector<8x1xf32>
    %cst_16 = arith.constant dense<0.000000e+00> : vector<8xf32>
    %25 = vector.multi_reduction <add>, %13, %cst_16 [1] : vector<8x128xf32> to vector<8xf32>
    %26 = vector.shape_cast %25 : vector<8xf32> to vector<8x1xf32>
    %27 = vector.broadcast %cst : f32 to vector<8x1xf32>
    %28 = arith.mulf %26, %27 : vector<8x1xf32>
    %29 = arith.mulf %13, %13 : vector<8x128xf32>
    %cst_17 = arith.constant dense<0.000000e+00> : vector<8xf32>
    %30 = vector.multi_reduction <add>, %29, %cst_17 [1] : vector<8x128xf32> to vector<8xf32>
    %31 = vector.shape_cast %30 : vector<8xf32> to vector<8x1xf32>
    %32 = vector.broadcast %cst : f32 to vector<8x1xf32>
    %33 = arith.mulf %31, %32 : vector<8x1xf32>
    %34 = arith.mulf %28, %28 : vector<8x1xf32>
    %35 = arith.subf %33, %34 : vector<8x1xf32>
    %cst_18 = arith.constant 0.000000e+00 : f32
    %36 = vector.broadcast %cst_18 : f32 to vector<8x1xf32>
    %37 = arith.maximumf %35, %36 : vector<8x1xf32>
    %38 = vector.broadcast %28 : vector<8x1xf32> to vector<8x128xf32>
    %39 = arith.subf %13, %38 : vector<8x128xf32>
    %cst_19 = arith.constant 9.99999974E-6 : f32
    %40 = vector.broadcast %cst_19 : f32 to vector<8x1xf32>
    %41 = arith.addf %37, %40 : vector<8x1xf32>
    %42 = math.rsqrt %41 : vector<8x1xf32>
    %43 = vector.broadcast %42 : vector<8x1xf32> to vector<8x128xf32>
    %44 = arith.mulf %39, %43 : vector<8x128xf32>
    %45 = vector.broadcast %18 : vector<8x1xf32> to vector<8x128xf32>
    %46 = arith.mulf %45, %44 : vector<8x128xf32>
    %47 = vector.broadcast %20 : vector<8x1xf32> to vector<8x128xf32>
    %48 = arith.addf %46, %47 : vector<8x128xf32>
    %cst_20 = arith.constant dense<0.000000e+00> : vector<8x128xf32>
    %49 = tpu.matmul %0, %48, %cst_20 {dimension_numbers = #tpu.dot_dimension_numbers<[1], [0], [0], [1], [0, 0, 1, 1], [], []>} : vector<8x8xf32>, vector<8x128xf32>, vector<8x128xf32> -> vector<8x128xf32>
    %50 = vector.broadcast %1 : vector<8x1xf32> to vector<8x128xf32>
    %51 = arith.addf %49, %50 : vector<8x128xf32>
    %c0_21 = arith.constant 0 : index
    %c0_22 = arith.constant 0 : index
    %52 = vector.load %arg10[%c0_21, %c0_22] : memref<8x128xf32, #tpu.memory_space<vmem>>, vector<8x128xf32>
    tpu.vector_store %arg10[%c0_21, %c0_22], %51 {strides = array<i32>} : memref<8x128xf32, #tpu.memory_space<vmem>>, vector<8x128xf32>,
    %cst_23 = arith.constant 0.000000e+00 : f32
    %53 = vector.broadcast %cst_23 : f32 to vector<8x128xf32>
    %54 = arith.cmpf oge, %48, %53 : vector<8x128xf32>
    %cst_24 = arith.constant 2.000000e-01 : f32
    %55 = vector.broadcast %cst_24 : f32 to vector<8x128xf32>
    %56 = arith.mulf %55, %48 : vector<8x128xf32>
    %57 = arith.select %54, %48, %56 : vector<8x128xi1>, vector<8x128xf32>
    %cst_25 = arith.constant dense<0.000000e+00> : vector<8xf32>
    %58 = vector.multi_reduction <add>, %57, %cst_25 [1] : vector<8x128xf32> to vector<8xf32>
    %59 = vector.shape_cast %58 : vector<8xf32> to vector<8x1xf32>
    %60 = vector.broadcast %cst : f32 to vector<8x1xf32>
    %61 = arith.mulf %59, %60 : vector<8x1xf32>
    %62 = arith.mulf %57, %57 : vector<8x128xf32>
    %cst_26 = arith.constant dense<0.000000e+00> : vector<8xf32>
    %63 = vector.multi_reduction <add>, %62, %cst_26 [1] : vector<8x128xf32> to vector<8xf32>
    %64 = vector.shape_cast %63 : vector<8xf32> to vector<8x1xf32>
    %65 = vector.broadcast %cst : f32 to vector<8x1xf32>
    %66 = arith.mulf %64, %65 : vector<8x1xf32>
    %67 = arith.mulf %61, %61 : vector<8x1xf32>
    %68 = arith.subf %66, %67 : vector<8x1xf32>
    %cst_27 = arith.constant 0.000000e+00 : f32
    %69 = vector.broadcast %cst_27 : f32 to vector<8x1xf32>
    %70 = arith.maximumf %68, %69 : vector<8x1xf32>
    %71 = vector.broadcast %61 : vector<8x1xf32> to vector<8x128xf32>
    %72 = arith.subf %57, %71 : vector<8x128xf32>
    %cst_28 = arith.constant 9.99999974E-6 : f32
    %73 = vector.broadcast %cst_28 : f32 to vector<8x1xf32>
    %74 = arith.addf %70, %73 : vector<8x1xf32>
    %75 = math.rsqrt %74 : vector<8x1xf32>
    %76 = vector.broadcast %75 : vector<8x1xf32> to vector<8x128xf32>
    %77 = arith.mulf %72, %76 : vector<8x128xf32>
    %78 = vector.broadcast %22 : vector<8x1xf32> to vector<8x128xf32>
    %79 = arith.mulf %78, %77 : vector<8x128xf32>
    %80 = vector.broadcast %24 : vector<8x1xf32> to vector<8x128xf32>
    %81 = arith.addf %79, %80 : vector<8x128xf32>
    %c1_i32_29 = arith.constant 1 : i32
    %82 = tpu.dynamic_rotate %81 by %c1_i32_29 dim 1 : vector<8x128xf32>, i32 -> vector<8x128xf32>
    %cst_30 = arith.constant 0.000000e+00 : f32
    %83 = vector.broadcast %cst_30 : f32 to vector<8x128xf32>
    %84 = arith.select %8, %82, %83 : vector<8x128xi1>, vector<8x128xf32>
    %c127_i32 = arith.constant 127 : i32
    %85 = tpu.dynamic_rotate %81 by %c127_i32 dim 1 : vector<8x128xf32>, i32 -> vector<8x128xf32>
    %cst_31 = arith.constant 0.000000e+00 : f32
    %86 = vector.broadcast %cst_31 : f32 to vector<8x128xf32>
    %87 = arith.select %10, %85, %86 : vector<8x128xi1>, vector<8x128xf32>
    %88 = tpu.concatenate %84, %81, %87 in 0 : vector<8x128xf32>, vector<8x128xf32>, vector<8x128xf32> -> vector<24x128xf32>
    %cst_32 = arith.constant dense<0.000000e+00> : vector<8x128xf32>
    %89 = tpu.matmul %2, %88, %cst_32 {dimension_numbers = #tpu.dot_dimension_numbers<[1], [0], [0], [1], [0, 0, 1, 1], [], []>} : vector<8x24xf32>, vector<24x128xf32>, vector<8x128xf32> -> vector<8x128xf32>
    %90 = vector.broadcast %3 : vector<8x1xf32> to vector<8x128xf32>
    %91 = arith.addf %89, %90 : vector<8x128xf32>
    %cst_33 = arith.constant 0.000000e+00 : f32
    %92 = vector.broadcast %cst_33 : f32 to vector<8x128xf32>
    %93 = arith.cmpf oge, %91, %92 : vector<8x128xf32>
    %cst_34 = arith.constant 2.000000e-01 : f32
    %94 = vector.broadcast %cst_34 : f32 to vector<8x128xf32>
    %95 = arith.mulf %94, %91 : vector<8x128xf32>
    %96 = arith.select %93, %91, %95 : vector<8x128xi1>, vector<8x128xf32>
    %c1_i32_35 = arith.constant 1 : i32
    %97 = tpu.dynamic_rotate %96 by %c1_i32_35 dim 1 : vector<8x128xf32>, i32 -> vector<8x128xf32>
    %cst_36 = arith.constant 0.000000e+00 : f32
    %98 = vector.broadcast %cst_36 : f32 to vector<8x128xf32>
    %99 = arith.select %8, %97, %98 : vector<8x128xi1>, vector<8x128xf32>
    %c127_i32_37 = arith.constant 127 : i32
    %100 = tpu.dynamic_rotate %96 by %c127_i32_37 dim 1 : vector<8x128xf32>, i32 -> vector<8x128xf32>
    %cst_38 = arith.constant 0.000000e+00 : f32
    %101 = vector.broadcast %cst_38 : f32 to vector<8x128xf32>
    %102 = arith.select %10, %100, %101 : vector<8x128xi1>, vector<8x128xf32>
    %103 = tpu.concatenate %99, %96, %102 in 0 : vector<8x128xf32>, vector<8x128xf32>, vector<8x128xf32> -> vector<24x128xf32>
    %cst_39 = arith.constant dense<0.000000e+00> : vector<8x128xf32>
    %104 = tpu.matmul %4, %103, %cst_39 {dimension_numbers = #tpu.dot_dimension_numbers<[1], [0], [0], [1], [0, 0, 1, 1], [], []>} : vector<8x24xf32>, vector<24x128xf32>, vector<8x128xf32> -> vector<8x128xf32>
    %105 = vector.broadcast %5 : vector<8x1xf32> to vector<8x128xf32>
    %106 = arith.addf %104, %105 : vector<8x128xf32>
    %c0_40 = arith.constant 0 : index
    %c0_41 = arith.constant 0 : index
    %107 = vector.load %arg10[%c0_40, %c0_41] : memref<8x128xf32, #tpu.memory_space<vmem>>, vector<8x128xf32>
    %108 = arith.addf %106, %107 : vector<8x128xf32>
    %109 = arith.index_cast %c0_i32 : i32 to index
    %c0_42 = arith.constant 0 : index
    %c0_43 = arith.constant 0 : index
    %110 = vector.load %arg9[%109, %c0_42, %c0_43] : memref<2x8x128xf32, #tpu.memory_space<vmem>>, vector<1x8x128xf32>
    %111 = vector.shape_cast %110 : vector<1x8x128xf32> to vector<8x128xf32>
    %112 = vector.shape_cast %108 : vector<8x128xf32> to vector<1x8x128xf32>
    tpu.vector_store %arg9[%109, %c0_42, %c0_43], %112 {strides = array<i32>} : memref<2x8x128xf32, #tpu.memory_space<vmem>>, vector<1x8x128xf32>,
    %c1_i32_44 = arith.constant 1 : i32
    %113 = arith.index_cast %c1_i32_44 : i32 to index
    %c0_45 = arith.constant 0 : index
    %c0_46 = arith.constant 0 : index
    %114 = vector.load %arg1[%113, %c0_45, %c0_46] : memref<2x8x128xf32, #tpu.memory_space<vmem>>, vector<1x8x128xf32>
    %115 = vector.shape_cast %114 : vector<1x8x128xf32> to vector<8x128xf32>
    %116 = arith.index_cast %c1_i32_44 : i32 to index
    %c0_47 = arith.constant 0 : index
    %c0_48 = arith.constant 0 : index
    %c0_49 = arith.constant 0 : index
    %117 = vector.load %arg2[%116, %c0_47, %c0_48, %c0_49] : memref<2x4x8x1xf32, #tpu.memory_space<vmem>>, vector<1x4x8x1xf32>
    %118 = vector.shape_cast %117 : vector<1x4x8x1xf32> to vector<4x8x1xf32>
    %119 = vector.extract_strided_slice %118 {offsets = [0, 0, 0], sizes = [1, 8, 1], strides = [1, 1, 1]} : vector<4x8x1xf32> to vector<1x8x1xf32>
    %120 = vector.shape_cast %119 : vector<1x8x1xf32> to vector<8x1xf32>
    %121 = vector.extract_strided_slice %118 {offsets = [1, 0, 0], sizes = [1, 8, 1], strides = [1, 1, 1]} : vector<4x8x1xf32> to vector<1x8x1xf32>
    %122 = vector.shape_cast %121 : vector<1x8x1xf32> to vector<8x1xf32>
    %123 = vector.extract_strided_slice %118 {offsets = [2, 0, 0], sizes = [1, 8, 1], strides = [1, 1, 1]} : vector<4x8x1xf32> to vector<1x8x1xf32>
    %124 = vector.shape_cast %123 : vector<1x8x1xf32> to vector<8x1xf32>
    %125 = vector.extract_strided_slice %118 {offsets = [3, 0, 0], sizes = [1, 8, 1], strides = [1, 1, 1]} : vector<4x8x1xf32> to vector<1x8x1xf32>
    %126 = vector.shape_cast %125 : vector<1x8x1xf32> to vector<8x1xf32>
    %cst_50 = arith.constant dense<0.000000e+00> : vector<8xf32>
    %127 = vector.multi_reduction <add>, %115, %cst_50 [1] : vector<8x128xf32> to vector<8xf32>
    %128 = vector.shape_cast %127 : vector<8xf32> to vector<8x1xf32>
    %129 = vector.broadcast %cst : f32 to vector<8x1xf32>
    %130 = arith.mulf %128, %129 : vector<8x1xf32>
    %131 = arith.mulf %115, %115 : vector<8x128xf32>
    %cst_51 = arith.constant dense<0.000000e+00> : vector<8xf32>
    %132 = vector.multi_reduction <add>, %131, %cst_51 [1] : vector<8x128xf32> to vector<8xf32>
    %133 = vector.shape_cast %132 : vector<8xf32> to vector<8x1xf32>
    %134 = vector.broadcast %cst : f32 to vector<8x1xf32>
    %135 = arith.mulf %133, %134 : vector<8x1xf32>
    %136 = arith.mulf %130, %130 : vector<8x1xf32>
    %137 = arith.subf %135, %136 : vector<8x1xf32>
    %cst_52 = arith.constant 0.000000e+00 : f32
    %138 = vector.broadcast %cst_52 : f32 to vector<8x1xf32>
    %139 = arith.maximumf %137, %138 : vector<8x1xf32>
    %140 = vector.broadcast %130 : vector<8x1xf32> to vector<8x128xf32>
    %141 = arith.subf %115, %140 : vector<8x128xf32>
    %cst_53 = arith.constant 9.99999974E-6 : f32
    %142 = vector.broadcast %cst_53 : f32 to vector<8x1xf32>
    %143 = arith.addf %139, %142 : vector<8x1xf32>
    %144 = math.rsqrt %143 : vector<8x1xf32>
    %145 = vector.broadcast %144 : vector<8x1xf32> to vector<8x128xf32>
    %146 = arith.mulf %141, %145 : vector<8x128xf32>
    %147 = vector.broadcast %120 : vector<8x1xf32> to vector<8x128xf32>
    %148 = arith.mulf %147, %146 : vector<8x128xf32>
    %149 = vector.broadcast %122 : vector<8x1xf32> to vector<8x128xf32>
    %150 = arith.addf %148, %149 : vector<8x128xf32>
    %cst_54 = arith.constant dense<0.000000e+00> : vector<8x128xf32>
    %151 = tpu.matmul %0, %150, %cst_54 {dimension_numbers = #tpu.dot_dimension_numbers<[1], [0], [0], [1], [0, 0, 1, 1], [], []>} : vector<8x8xf32>, vector<8x128xf32>, vector<8x128xf32> -> vector<8x128xf32>
    %152 = vector.broadcast %1 : vector<8x1xf32> to vector<8x128xf32>
    %153 = arith.addf %151, %152 : vector<8x128xf32>
    %c0_55 = arith.constant 0 : index
    %c0_56 = arith.constant 0 : index
    %154 = vector.load %arg10[%c0_55, %c0_56] : memref<8x128xf32, #tpu.memory_space<vmem>>, vector<8x128xf32>
    tpu.vector_store %arg10[%c0_55, %c0_56], %153 {strides = array<i32>} : memref<8x128xf32, #tpu.memory_space<vmem>>, vector<8x128xf32>,
    %cst_57 = arith.constant 0.000000e+00 : f32
    %155 = vector.broadcast %cst_57 : f32 to vector<8x128xf32>
    %156 = arith.cmpf oge, %150, %155 : vector<8x128xf32>
    %cst_58 = arith.constant 2.000000e-01 : f32
    %157 = vector.broadcast %cst_58 : f32 to vector<8x128xf32>
    %158 = arith.mulf %157, %150 : vector<8x128xf32>
    %159 = arith.select %156, %150, %158 : vector<8x128xi1>, vector<8x128xf32>
    %cst_59 = arith.constant dense<0.000000e+00> : vector<8xf32>
    %160 = vector.multi_reduction <add>, %159, %cst_59 [1] : vector<8x128xf32> to vector<8xf32>
    %161 = vector.shape_cast %160 : vector<8xf32> to vector<8x1xf32>
    %162 = vector.broadcast %cst : f32 to vector<8x1xf32>
    %163 = arith.mulf %161, %162 : vector<8x1xf32>
    %164 = arith.mulf %159, %159 : vector<8x128xf32>
    %cst_60 = arith.constant dense<0.000000e+00> : vector<8xf32>
    %165 = vector.multi_reduction <add>, %164, %cst_60 [1] : vector<8x128xf32> to vector<8xf32>
    %166 = vector.shape_cast %165 : vector<8xf32> to vector<8x1xf32>
    %167 = vector.broadcast %cst : f32 to vector<8x1xf32>
    %168 = arith.mulf %166, %167 : vector<8x1xf32>
    %169 = arith.mulf %163, %163 : vector<8x1xf32>
    %170 = arith.subf %168, %169 : vector<8x1xf32>
    %cst_61 = arith.constant 0.000000e+00 : f32
    %171 = vector.broadcast %cst_61 : f32 to vector<8x1xf32>
    %172 = arith.maximumf %170, %171 : vector<8x1xf32>
    %173 = vector.broadcast %163 : vector<8x1xf32> to vector<8x128xf32>
    %174 = arith.subf %159, %173 : vector<8x128xf32>
    %cst_62 = arith.constant 9.99999974E-6 : f32
    %175 = vector.broadcast %cst_62 : f32 to vector<8x1xf32>
    %176 = arith.addf %172, %175 : vector<8x1xf32>
    %177 = math.rsqrt %176 : vector<8x1xf32>
    %178 = vector.broadcast %177 : vector<8x1xf32> to vector<8x128xf32>
    %179 = arith.mulf %174, %178 : vector<8x128xf32>
    %180 = vector.broadcast %124 : vector<8x1xf32> to vector<8x128xf32>
    %181 = arith.mulf %180, %179 : vector<8x128xf32>
    %182 = vector.broadcast %126 : vector<8x1xf32> to vector<8x128xf32>
    %183 = arith.addf %181, %182 : vector<8x128xf32>
    %c1_i32_63 = arith.constant 1 : i32
    %184 = tpu.dynamic_rotate %183 by %c1_i32_63 dim 1 : vector<8x128xf32>, i32 -> vector<8x128xf32>
    %cst_64 = arith.constant 0.000000e+00 : f32
    %185 = vector.broadcast %cst_64 : f32 to vector<8x128xf32>
    %186 = arith.select %8, %184, %185 : vector<8x128xi1>, vector<8x128xf32>
    %c127_i32_65 = arith.constant 127 : i32
    %187 = tpu.dynamic_rotate %183 by %c127_i32_65 dim 1 : vector<8x128xf32>, i32 -> vector<8x128xf32>
    %cst_66 = arith.constant 0.000000e+00 : f32
    %188 = vector.broadcast %cst_66 : f32 to vector<8x128xf32>
    %189 = arith.select %10, %187, %188 : vector<8x128xi1>, vector<8x128xf32>
    %190 = tpu.concatenate %186, %183, %189 in 0 : vector<8x128xf32>, vector<8x128xf32>, vector<8x128xf32> -> vector<24x128xf32>
    %cst_67 = arith.constant dense<0.000000e+00> : vector<8x128xf32>
    %191 = tpu.matmul %2, %190, %cst_67 {dimension_numbers = #tpu.dot_dimension_numbers<[1], [0], [0], [1], [0, 0, 1, 1], [], []>} : vector<8x24xf32>, vector<24x128xf32>, vector<8x128xf32> -> vector<8x128xf32>
    %192 = vector.broadcast %3 : vector<8x1xf32> to vector<8x128xf32>
    %193 = arith.addf %191, %192 : vector<8x128xf32>
    %cst_68 = arith.constant 0.000000e+00 : f32
    %194 = vector.broadcast %cst_68 : f32 to vector<8x128xf32>
    %195 = arith.cmpf oge, %193, %194 : vector<8x128xf32>
    %cst_69 = arith.constant 2.000000e-01 : f32
    %196 = vector.broadcast %cst_69 : f32 to vector<8x128xf32>
    %197 = arith.mulf %196, %193 : vector<8x128xf32>
    %198 = arith.select %195, %193, %197 : vector<8x128xi1>, vector<8x128xf32>
    %c1_i32_70 = arith.constant 1 : i32
    %199 = tpu.dynamic_rotate %198 by %c1_i32_70 dim 1 : vector<8x128xf32>, i32 -> vector<8x128xf32>
    %cst_71 = arith.constant 0.000000e+00 : f32
    %200 = vector.broadcast %cst_71 : f32 to vector<8x128xf32>
    %201 = arith.select %8, %199, %200 : vector<8x128xi1>, vector<8x128xf32>
    %c127_i32_72 = arith.constant 127 : i32
    %202 = tpu.dynamic_rotate %198 by %c127_i32_72 dim 1 : vector<8x128xf32>, i32 -> vector<8x128xf32>
    %cst_73 = arith.constant 0.000000e+00 : f32
    %203 = vector.broadcast %cst_73 : f32 to vector<8x128xf32>
    %204 = arith.select %10, %202, %203 : vector<8x128xi1>, vector<8x128xf32>
    %205 = tpu.concatenate %201, %198, %204 in 0 : vector<8x128xf32>, vector<8x128xf32>, vector<8x128xf32> -> vector<24x128xf32>
    %cst_74 = arith.constant dense<0.000000e+00> : vector<8x128xf32>
    %206 = tpu.matmul %4, %205, %cst_74 {dimension_numbers = #tpu.dot_dimension_numbers<[1], [0], [0], [1], [0, 0, 1, 1], [], []>} : vector<8x24xf32>, vector<24x128xf32>, vector<8x128xf32> -> vector<8x128xf32>
    %207 = vector.broadcast %5 : vector<8x1xf32> to vector<8x128xf32>
    %208 = arith.addf %206, %207 : vector<8x128xf32>
    %c0_75 = arith.constant 0 : index
    %c0_76 = arith.constant 0 : index
    %209 = vector.load %arg10[%c0_75, %c0_76] : memref<8x128xf32, #tpu.memory_space<vmem>>, vector<8x128xf32>
    %210 = arith.addf %208, %209 : vector<8x128xf32>
    %211 = arith.index_cast %c1_i32_44 : i32 to index
    %c0_77 = arith.constant 0 : index
    %c0_78 = arith.constant 0 : index
    %212 = vector.load %arg9[%211, %c0_77, %c0_78] : memref<2x8x128xf32, #tpu.memory_space<vmem>>, vector<1x8x128xf32>
    %213 = vector.shape_cast %212 : vector<1x8x128xf32> to vector<8x128xf32>
    %214 = vector.shape_cast %210 : vector<8x128xf32> to vector<1x8x128xf32>
    tpu.vector_store %arg9[%211, %c0_77, %c0_78], %214 {strides = array<i32>} : memref<2x8x128xf32, #tpu.memory_space<vmem>>, vector<1x8x128xf32>,
    %c2_i32 = arith.constant 2 : i32
    return
  }
  func.func @transform_0(%arg0: i32) -> (i32, i32, i32) {
    %c0_i32 = arith.constant 0 : i32
    %c0_i32_0 = arith.constant 0 : i32
    %c0_i32_1 = arith.constant 0 : i32
    return %arg0, %c0_i32, %c0_i32_0 : i32, i32, i32
  }
  func.func @transform_1(%arg0: i32) -> (i32, i32, i32, i32) {
    %c0_i32 = arith.constant 0 : i32
    %c0_i32_0 = arith.constant 0 : i32
    %c0_i32_1 = arith.constant 0 : i32
    %c0_i32_2 = arith.constant 0 : i32
    return %arg0, %c0_i32, %c0_i32_0, %c0_i32_1 : i32, i32, i32, i32
  }
  func.func @transform_2(%arg0: i32) -> (i32, i32) {
    %c0_i32 = arith.constant 0 : i32
    %c0_i32_0 = arith.constant 0 : i32
    %c0_i32_1 = arith.constant 0 : i32
    return %c0_i32, %c0_i32_0 : i32, i32
  }
  func.func @transform_3(%arg0: i32) -> (i32, i32) {
    %c0_i32 = arith.constant 0 : i32
    %c0_i32_0 = arith.constant 0 : i32
    %c0_i32_1 = arith.constant 0 : i32
    return %c0_i32, %c0_i32_0 : i32, i32
  }
  func.func @transform_4(%arg0: i32) -> (i32, i32) {
    %c0_i32 = arith.constant 0 : i32
    %c0_i32_0 = arith.constant 0 : i32
    %c0_i32_1 = arith.constant 0 : i32
    return %c0_i32, %c0_i32_0 : i32, i32
  }
  func.func @transform_5(%arg0: i32) -> (i32, i32) {
    %c0_i32 = arith.constant 0 : i32
    %c0_i32_0 = arith.constant 0 : i32
    %c0_i32_1 = arith.constant 0 : i32
    return %c0_i32, %c0_i32_0 : i32, i32
  }
  func.func @transform_6(%arg0: i32) -> (i32, i32) {
    %c0_i32 = arith.constant 0 : i32
    %c0_i32_0 = arith.constant 0 : i32
    %c0_i32_1 = arith.constant 0 : i32
    return %c0_i32, %c0_i32_0 : i32, i32
  }
  func.func @transform_7(%arg0: i32) -> (i32, i32) {
    %c0_i32 = arith.constant 0 : i32
    %c0_i32_0 = arith.constant 0 : i32
    %c0_i32_1 = arith.constant 0 : i32
    return %c0_i32, %c0_i32_0 : i32, i32
  }
  func.func @transform_8(%arg0: i32) -> (i32, i32, i32) {
    %c0_i32 = arith.constant 0 : i32
    %c0_i32_0 = arith.constant 0 : i32
    %c0_i32_1 = arith.constant 0 : i32
    return %arg0, %c0_i32, %c0_i32_0 : i32, i32, i32
  }
}

</mosaic_0001>

<llo_original>
// kernel: tpu_custom_call.1
$region0: #{tpu_custom_call.1}
  #allocation0 [shape = 'u32[]', space=smem, size = 0x4, offset = 0x4, fixed_abs, tag = 'smem constant byte address 0x4 - core index']
  #allocation1 [shape = 'u32[144,128]{1,0:T(1,128)}', space=vmem, size = 0x12000, scoped, tag = 'internal scratch']
  #allocation2 [shape = 'f32[8,128]{1,0:T(8,128)}', space=vmem, size = 0x1000, scoped, tag = 'scratch operand']
  %s0 = inlined_call_operand.vmem [shape: f32[4,8,128], index: 0, kind: input, shape index: {}]
  %s1 = inlined_call_operand.vmem [shape: f32[4,4,8,1], index: 1, kind: input, shape index: {}]
  %s2 = inlined_call_operand.vmem [shape: f32[8,8], index: 2, kind: input, shape index: {}]
  %s3 = inlined_call_operand.vmem [shape: f32[8,1], index: 3, kind: input, shape index: {}]
  %s4 = inlined_call_operand.vmem [shape: f32[8,24], index: 4, kind: input, shape index: {}]
  %s5 = inlined_call_operand.vmem [shape: f32[8,1], index: 5, kind: input, shape index: {}]
  %s6 = inlined_call_operand.vmem [shape: f32[8,24], index: 6, kind: input, shape index: {}]
  %s7 = inlined_call_operand.vmem [shape: f32[8,1], index: 7, kind: input, shape index: {}]
  %s8 = inlined_call_operand.hbm [shape: f32[4,8,128], index: 8, kind: output, shape index: {}]
  %s9 = sld [smem:[#allocation0]]
  $region65: #{tpu_custom_call.1} parent=0
    _
  %s11 = ssub.s32 1, %s9
  %s12 = scalar_select 0, %s11, %s9
  $region1: #{tpu_custom_call.1} parent=0
    #allocation3 [shape = 'u8[16384]{0}', space=vmem, size = 0x4000, scoped, tag = 'output window, operand 0']
    #allocation4 [shape = 's32[2]{0}', space=sflag, size = 0x8, scoped, tag = 'scoped memory for tpu_custom_call.1']
    %13 = vsyncpa [#allocation4], 0
    %s14 = scalar_lea.sflag [#allocation4], 1
    %15 = vsyncpa %s14, 0
    loop: start=0, step=1, limit=4
    $region2: #{tpu_custom_call.1} parent=1 // loop_pre_header
      _
    $region3: #{tpu_custom_call.1} parent=1 // loop_header
      %s17 = sphi 0, %s21
      %p18 = scmp.ge.s32.totalorder %s17, 4
      %s27 = sphi 0, %s29
      %s30 = sphi 0, %s27
      %s31 = sphi 0, %s30
      %s47 = sphi 0, %s31
      %s53 = sphi 0, %s55
      %s56 = sphi 0, %s53
      %s57 = sphi 0, %s56
      %s73 = sphi 0, %s57
      %s77 = sphi 0, %s77
      %s79 = sphi 0, %s77
      %s80 = sphi 0, %s79
      %s94 = sphi 0, %s80
      %s98 = sphi 0, %s98
      %s100 = sphi 0, %s98
      %s101 = sphi 0, %s100
      %s115 = sphi 0, %s101
      %s119 = sphi 0, %s119
      %s121 = sphi 0, %s119
      %s122 = sphi 0, %s121
      %s136 = sphi 0, %s122
      %s140 = sphi 0, %s140
      %s142 = sphi 0, %s140
      %s143 = sphi 0, %s142
      %s157 = sphi 0, %s143
      %s161 = sphi 0, %s161
      %s163 = sphi 0, %s161
      %s164 = sphi 0, %s163
      %s178 = sphi 0, %s164
      %s182 = sphi 0, %s182
      %s184 = sphi 0, %s182
      %s185 = sphi 0, %s184
      %s199 = sphi 0, %s185
      %s205 = sphi 0, %s207
      %s208 = sphi 0, %s205
      %s209 = sphi 0, %s208
      %s225 = sphi 0, %s209
    $region4: #{tpu_custom_call.1} parent=1 // loop_header_branch
      %20 = sbr.rel (%p18) target = $region8
    $region5: #{tpu_custom_call.1} parent=1 // loop_body
      %s22 = ssub.s32 %s17, 1
      %s23 = ssub.s32 %s17, 2
      %s24 = sadd.s32 %s17, 1
      %s25 = ssub.s32 %s17, %s24
      %p26 = scmp.eq.s32.totalorder %s25, 0
      %s28 = sadd.s32 %s27, 1
      %s29 = scalar_select %p26, %s27, %s28
      %p32 = pneg %p26
      %p33 = scmp.eq.s32.totalorder %s17, 1
      %p34 = por %p32, %p33
      %p35 = scmp.ne.s32.totalorder %s27, %s30
      %p36 = scmp.eq.s32.totalorder %s17, 0
      %p37 = por %p35, %p36
      %p38 = scmp.ne.s32.totalorder %s27, %s30
      %p39 = scmp.eq.s32.totalorder %s22, 1
      %p40 = por %p38, %p39
      %p41 = scmp.ne.s32.totalorder %s30, %s31
      %p42 = scmp.eq.s32.totalorder %s22, 0
      %p43 = por %p41, %p42
      %p44 = scmp.ne.s32.totalorder %s30, %s31
      %p45 = scmp.eq.s32.totalorder %s23, 1
      %p46 = por %p44, %p45
      %p48 = scmp.ne.s32.totalorder %s31, %s47
      %p49 = scmp.eq.s32.totalorder %s23, 0
      %p50 = por %p48, %p49
      %s51 = ssub.s32 %s17, %s24
      %p52 = scmp.eq.s32.totalorder %s51, 0
      %s54 = sadd.s32 %s53, 1
      %s55 = scalar_select %p52, %s53, %s54
      %p58 = pneg %p52
      %p59 = scmp.eq.s32.totalorder %s17, 1
      %p60 = por %p58, %p59
      %p61 = scmp.ne.s32.totalorder %s53, %s56
      %p62 = scmp.eq.s32.totalorder %s17, 0
      %p63 = por %p61, %p62
      %p64 = scmp.ne.s32.totalorder %s53, %s56
      %p65 = scmp.eq.s32.totalorder %s22, 1
      %p66 = por %p64, %p65
      %p67 = scmp.ne.s32.totalorder %s56, %s57
      %p68 = scmp.eq.s32.totalorder %s22, 0
      %p69 = por %p67, %p68
      %p70 = scmp.ne.s32.totalorder %s56, %s57
      %p71 = scmp.eq.s32.totalorder %s23, 1
      %p72 = por %p70, %p71
      %p74 = scmp.ne.s32.totalorder %s57, %s73
      %p75 = scmp.eq.s32.totalorder %s23, 0
      %p76 = por %p74, %p75
      %s78 = sadd.s32 %s77, 1
      %p81 = scmp.eq.s32.totalorder %s17, 1
      %p82 = scmp.ne.s32.totalorder %s77, %s79
      %p83 = scmp.eq.s32.totalorder %s17, 0
      %p84 = por %p82, %p83
      %p85 = scmp.ne.s32.totalorder %s77, %s79
      %p86 = scmp.eq.s32.totalorder %s22, 1
      %p87 = por %p85, %p86
      %p88 = scmp.ne.s32.totalorder %s79, %s80
      %p89 = scmp.eq.s32.totalorder %s22, 0
      %p90 = por %p88, %p89
      %p91 = scmp.ne.s32.totalorder %s79, %s80
      %p92 = scmp.eq.s32.totalorder %s23, 1
      %p93 = por %p91, %p92
      %p95 = scmp.ne.s32.totalorder %s80, %s94
      %p96 = scmp.eq.s32.totalorder %s23, 0
      %p97 = por %p95, %p96
      %s99 = sadd.s32 %s98, 1
      %p102 = scmp.eq.s32.totalorder %s17, 1
      %p103 = scmp.ne.s32.totalorder %s98, %s100
      %p104 = scmp.eq.s32.totalorder %s17, 0
      %p105 = por %p103, %p104
      %p106 = scmp.ne.s32.totalorder %s98, %s100
      %p107 = scmp.eq.s32.totalorder %s22, 1
      %p108 = por %p106, %p107
      %p109 = scmp.ne.s32.totalorder %s100, %s101
      %p110 = scmp.eq.s32.totalorder %s22, 0
      %p111 = por %p109, %p110
      %p112 = scmp.ne.s32.totalorder %s100, %s101
      %p113 = scmp.eq.s32.totalorder %s23, 1
      %p114 = por %p112, %p113
      %p116 = scmp.ne.s32.totalorder %s101, %s115
      %p117 = scmp.eq.s32.totalorder %s23, 0
      %p118 = por %p116, %p117
      %s120 = sadd.s32 %s119, 1
      %p123 = scmp.eq.s32.totalorder %s17, 1
      %p124 = scmp.ne.s32.totalorder %s119, %s121
      %p125 = scmp.eq.s32.totalorder %s17, 0
      %p126 = por %p124, %p125
      %p127 = scmp.ne.s32.totalorder %s119, %s121
      %p128 = scmp.eq.s32.totalorder %s22, 1
      %p129 = por %p127, %p128
      %p130 = scmp.ne.s32.totalorder %s121, %s122
      %p131 = scmp.eq.s32.totalorder %s22, 0
      %p132 = por %p130, %p131
      %p133 = scmp.ne.s32.totalorder %s121, %s122
      %p134 = scmp.eq.s32.totalorder %s23, 1
      %p135 = por %p133, %p134
      %p137 = scmp.ne.s32.totalorder %s122, %s136
      %p138 = scmp.eq.s32.totalorder %s23, 0
      %p139 = por %p137, %p138
      %s141 = sadd.s32 %s140, 1
      %p144 = scmp.eq.s32.totalorder %s17, 1
      %p145 = scmp.ne.s32.totalorder %s140, %s142
      %p146 = scmp.eq.s32.totalorder %s17, 0
      %p147 = por %p145, %p146
      %p148 = scmp.ne.s32.totalorder %s140, %s142
      %p149 = scmp.eq.s32.totalorder %s22, 1
      %p150 = por %p148, %p149
      %p151 = scmp.ne.s32.totalorder %s142, %s143
      %p152 = scmp.eq.s32.totalorder %s22, 0
      %p153 = por %p151, %p152
      %p154 = scmp.ne.s32.totalorder %s142, %s143
      %p155 = scmp.eq.s32.totalorder %s23, 1
      %p156 = por %p154, %p155
      %p158 = scmp.ne.s32.totalorder %s143, %s157
      %p159 = scmp.eq.s32.totalorder %s23, 0
      %p160 = por %p158, %p159
      %s162 = sadd.s32 %s161, 1
      %p165 = scmp.eq.s32.totalorder %s17, 1
      %p166 = scmp.ne.s32.totalorder %s161, %s163
      %p167 = scmp.eq.s32.totalorder %s17, 0
      %p168 = por %p166, %p167
      %p169 = scmp.ne.s32.totalorder %s161, %s163
      %p170 = scmp.eq.s32.totalorder %s22, 1
      %p171 = por %p169, %p170
      %p172 = scmp.ne.s32.totalorder %s163, %s164
      %p173 = scmp.eq.s32.totalorder %s22, 0
      %p174 = por %p172, %p173
      %p175 = scmp.ne.s32.totalorder %s163, %s164
      %p176 = scmp.eq.s32.totalorder %s23, 1
      %p177 = por %p175, %p176
      %p179 = scmp.ne.s32.totalorder %s164, %s178
      %p180 = scmp.eq.s32.totalorder %s23, 0
      %p181 = por %p179, %p180
      %s183 = sadd.s32 %s182, 1
      %p186 = scmp.eq.s32.totalorder %s17, 1
      %p187 = scmp.ne.s32.totalorder %s182, %s184
      %p188 = scmp.eq.s32.totalorder %s17, 0
      %p189 = por %p187, %p188
      %p190 = scmp.ne.s32.totalorder %s182, %s184
      %p191 = scmp.eq.s32.totalorder %s22, 1
      %p192 = por %p190, %p191
      %p193 = scmp.ne.s32.totalorder %s184, %s185
      %p194 = scmp.eq.s32.totalorder %s22, 0
      %p195 = por %p193, %p194
      %p196 = scmp.ne.s32.totalorder %s184, %s185
      %p197 = scmp.eq.s32.totalorder %s23, 1
      %p198 = por %p196, %p197
      %p200 = scmp.ne.s32.totalorder %s185, %s199
      %p201 = scmp.eq.s32.totalorder %s23, 0
      %p202 = por %p200, %p201
      %s203 = ssub.s32 %s17, %s24
      %p204 = scmp.eq.s32.totalorder %s203, 0
      %s206 = sadd.s32 %s205, 1
      %s207 = scalar_select %p204, %s205, %s206
      %p210 = pneg %p204
      %p211 = scmp.eq.s32.totalorder %s17, 1
      %p212 = por %p210, %p211
      %p213 = scmp.ne.s32.totalorder %s205, %s208
      %p214 = scmp.eq.s32.totalorder %s17, 0
      %p215 = por %p213, %p214
      %p216 = scmp.ne.s32.totalorder %s205, %s208
      %p217 = scmp.eq.s32.totalorder %s22, 1
      %p218 = por %p216, %p217
      %p219 = scmp.ne.s32.totalorder %s208, %s209
      %p220 = scmp.eq.s32.totalorder %s22, 0
      %p221 = por %p219, %p220
      %p222 = scmp.ne.s32.totalorder %s208, %s209
      %p223 = scmp.eq.s32.totalorder %s23, 1
      %p224 = por %p222, %p223
      %p226 = scmp.ne.s32.totalorder %s209, %s225
      %p227 = scmp.eq.s32.totalorder %s23, 0
      %p228 = por %p226, %p227
      %p229 = scmp.le.s32.totalorder 1, %s17
      %p230 = scmp.lt.s32.totalorder %s17, 3
      %p231 = pnand %p229, %p230
      %p232 = pneg %p231
      // Predicated region
      $region9: #{tpu_custom_call.1} parent=5 // pred_check
        _
      $region10: #{tpu_custom_call.1} parent=5 // pred_check_branch
        %234 = sbr.rel (%p231) target = $region12
      $region11: #{tpu_custom_call.1} parent=5 // pred_region
        %s235 = ssub.s32 %s17, 1
        // Predicated region
        $region13: #{tpu_custom_call.1} parent=11 // pred_check
          %p236 = pneg %p90
        $region14: #{tpu_custom_call.1} parent=11 // pred_check_branch
          %238 = sbr.rel (%p236) target = $region16
        $region15: #{tpu_custom_call.1} parent=11 // pred_region
          _
        $region16: #{tpu_custom_call.1} parent=11 // pred_fallthru
          _
        // Predicated region
        $region17: #{tpu_custom_call.1} parent=11 // pred_check
          %p239 = pneg %p111
        $region18: #{tpu_custom_call.1} parent=11 // pred_check_branch
          %241 = sbr.rel (%p239) target = $region20
        $region19: #{tpu_custom_call.1} parent=11 // pred_region
          _
        $region20: #{tpu_custom_call.1} parent=11 // pred_fallthru
          _
        // Predicated region
        $region21: #{tpu_custom_call.1} parent=11 // pred_check
          %p242 = pneg %p132
        $region22: #{tpu_custom_call.1} parent=11 // pred_check_branch
          %244 = sbr.rel (%p242) target = $region24
        $region23: #{tpu_custom_call.1} parent=11 // pred_region
          _
        $region24: #{tpu_custom_call.1} parent=11 // pred_fallthru
          _
        // Predicated region
        $region25: #{tpu_custom_call.1} parent=11 // pred_check
          %p245 = pneg %p153
        $region26: #{tpu_custom_call.1} parent=11 // pred_check_branch
          %247 = sbr.rel (%p245) target = $region28
        $region27: #{tpu_custom_call.1} parent=11 // pred_region
          _
        $region28: #{tpu_custom_call.1} parent=11 // pred_fallthru
          _
        // Predicated region
        $region29: #{tpu_custom_call.1} parent=11 // pred_check
          %p248 = pneg %p174
        $region30: #{tpu_custom_call.1} parent=11 // pred_check_branch
          %250 = sbr.rel (%p248) target = $region32
        $region31: #{tpu_custom_call.1} parent=11 // pred_region
          _
        $region32: #{tpu_custom_call.1} parent=11 // pred_fallthru
          _
        // Predicated region
        $region33: #{tpu_custom_call.1} parent=11 // pred_check
          %p251 = pneg %p195
        $region34: #{tpu_custom_call.1} parent=11 // pred_check_branch
          %253 = sbr.rel (%p251) target = $region36
        $region35: #{tpu_custom_call.1} parent=11 // pred_region
          _
        $region36: #{tpu_custom_call.1} parent=11 // pred_fallthru
          _
      $region12: #{tpu_custom_call.1} parent=5 // pred_fallthru
        _
      %p254 = scmp.lt.s32.totalorder %s17, 2
      // Predicated region
      $region37: #{tpu_custom_call.1} parent=5 // pred_check
        %p255 = pneg %p254
      $region38: #{tpu_custom_call.1} parent=5 // pred_check_branch
        %257 = sbr.rel (%p255) target = $region40
      $region39: #{tpu_custom_call.1} parent=5 // pred_region
        // Predicated region
        $region41: #{tpu_custom_call.1} parent=39 // pred_check
          %p258 = pneg %p37
        $region42: #{tpu_custom_call.1} parent=39 // pred_check_branch
          %260 = sbr.rel (%p258) target = $region44
        $region43: #{tpu_custom_call.1} parent=39 // pred_region
          %s261 = smul.u32 2, %s17
          %p262 = scmp.lt.s32.totalorder %s261, 3
          %s263 = scalar_select %p262, %s261, 3
          %s264 = smul.addr %s263, 8
          %s265 = scalar_lea.vmem %s0, %s264
          %s266 = smul.u32 2, %s17
        $region44: #{tpu_custom_call.1} parent=39 // pred_fallthru
          _
        // Predicated region
        $region45: #{tpu_custom_call.1} parent=39 // pred_check
          %p267 = pneg %p63
        $region46: #{tpu_custom_call.1} parent=39 // pred_check_branch
          %269 = sbr.rel (%p267) target = $region48
        $region47: #{tpu_custom_call.1} parent=39 // pred_region
          %s270 = smul.u32 2, %s17
          %p271 = scmp.lt.s32.totalorder %s270, 3
          %s272 = scalar_select %p271, %s270, 3
          %s273 = smul.addr %s272, 4
          %s274 = smul.addr %s273, 8
          %s275 = scalar_lea.vmem %s1, %s274
          %s276 = smul.u32 2, %s17
        $region48: #{tpu_custom_call.1} parent=39 // pred_fallthru
          _
      $region40: #{tpu_custom_call.1} parent=5 // pred_fallthru
        _
      %p277 = scmp.le.s32.totalorder 1, %s17
      %p278 = scmp.lt.s32.totalorder %s17, 3
      %p279 = pnand %p277, %p278
      %p280 = pneg %p279
      // Predicated region
      $region49: #{tpu_custom_call.1} parent=5 // pred_check
        _
      $region50: #{tpu_custom_call.1} parent=5 // pred_check_branch
        %282 = sbr.rel (%p279) target = $region52
      $region51: #{tpu_custom_call.1} parent=5 // pred_region
        %s283 = ssub.s32 %s17, 1
        %s284 = smul.u32 2, %s22
        %p285 = scmp.lt.s32.totalorder %s284, 3
        %s286 = scalar_select %p285, %s284, 3
        %s287 = smul.addr %s286, 8
        %s288 = scalar_lea.vmem %s0, %s287
        %p289 = pneg %p43
        %p290 = pneg %p40
        %s291 = smul.u32 2, %s22
        %p292 = scmp.lt.s32.totalorder %s291, 3
        %s293 = scalar_select %p292, %s291, 3
        %s294 = smul.addr %s293, 4
        %s295 = smul.addr %s294, 8
        %s296 = scalar_lea.vmem %s1, %s295
        %p297 = pneg %p69
        %p298 = pneg %p66
        %p299 = pneg %p90
        %p300 = pneg %p87
        %p301 = pneg %p111
        %p302 = pneg %p108
        %p303 = pneg %p132
        %p304 = pneg %p129
        %p305 = pneg %p153
        %p306 = pneg %p150
        %p307 = pneg %p174
        %p308 = pneg %p171
        %p309 = pneg %p195
        %p310 = pneg %p192
        %p311 = pneg %p221
        %p312 = pneg %p218
        %s313 = sand.u32 %s208, 1
        %s314 = scalar_lea.sflag [#allocation4], %s313
        %s315 = sand.u32 %s208, 1
        %s316 = smul.addr %s315, 16
        %s317 = scalar_lea.vmem [#allocation3], %s316
        %s318 = smul.u32 2, %s22
        %p319 = scmp.lt.s32.totalorder %s318, 3
        %s320 = scalar_select %p319, %s318, 3
        %s321 = smul.addr %s320, 8
        %s322 = scalar_lea.vmem %s0, %s321
        %s323 = smul.u32 2, %s22
        %s324 = smul.u32 2, %s22
        %p325 = scmp.lt.s32.totalorder %s324, 3
        %s326 = scalar_select %p325, %s324, 3
        %s327 = smul.addr %s326, 4
        %s328 = smul.addr %s327, 8
        %s329 = scalar_lea.vmem %s1, %s328
        %s330 = smul.u32 2, %s22
        %s331 = smul.u32 2, %s22
        %v332 = vld [vmem:[%s2] sm:$0xff]
        %v333 = vld [vmem:[%s3] sm:$0xff]
        %v334 = vld [vmem:[%s4] sm:$0xff]
        %v335 = vld [vmem:[%s5] sm:$0xff]
        %v336 = vld [vmem:[%s6] sm:$0xff]
        %v337 = vld [vmem:[%s7] sm:$0xff]
        %v338 = vlaneseq
        %v339 = vand.u32 %v338, 127
        %vm340 = vcmp.ge.s32.totalorder %v339, 1
        %vm341 = vcmp.le.s32.totalorder %v339, 126
        %v342 = vld [vmem:[%s322] sm:$0xff]
        %v343 = vld [vmem:[%s329] sm:$0xff]
        %v344 = vld [vmem:[%s329 + $0x8] sm:$0xff]
        %v345 = vld [vmem:[%s329 + $0x10] sm:$0xff]
        %v346 = vld [vmem:[%s329 + $0x18] sm:$0xff]
        %347 = vadd.xlane.f32.xlu0 %v342
        %v348 = vpop.xlane.xlu0 %347
        %v349 = vmul.f32 %v348, 0.0078125
        %v350 = vmul.f32 %v342, %v342
        %351 = vadd.xlane.f32.xlu0 %v350
        %v352 = vpop.xlane.xlu0 %351
        %v353 = vmul.f32 %v352, 0.0078125
        %v354 = vmul.f32 %v349, %v349
        %v355 = vsub.f32 %v353, %v354
        %v356 = vmax.f32 %v355, 0.0
        %v357 = vsub.f32 %v342, %v349
        %v358 = vadd.f32 %v356, 1e-05
        %v359 = vrsqrt.pop %v358
        %v360 = vmul.f32 %v357, %v359
        %362 = vset.pattern.permute.xlu0 0
        %363 = vperm.xlu0 %362, %v343
        %v364 = vpop.permute.xlu0 %363
        %v366 = vmul.f32 %v364, %v360
        %368 = vset.pattern.permute.xlu0 0
        %369 = vperm.xlu0 %368, %v344
        %v370 = vpop.permute.xlu0 %369
        %v372 = vadd.f32 %v366, %v370
        %374 = vset.pattern.permute.xlu0 0
        %375 = vperm.xlu0 %374, %v333
        %v376 = vpop.permute.xlu0 %375
        %vm378 = vcmask 64512
        %v380 = vsel %vm378, %v332, 0
        %382 = vmatprep.subr.mxu0 0.0
        %383 = vmatpush1.msra.mxu0 %v372
        %384 = vmatprep.subr.mxu0 0.0
        %385 = vmatpush1.msra.mxu0 0.0
        %386 = vmatprep.subr.mxu0 0.0
        %387 = vmatpush1.msra.mxu0 0.0
        %388 = vmatprep.subr.mxu0 0.0
        %389 = vmatpush1.msra.mxu0 0.0
        %390 = vmatprep.subr.mxu0 0.0
        %391 = vmatpush1.msra.mxu0 0.0
        %392 = vmatprep.subr.mxu0 0.0
        %393 = vmatpush1.msra.mxu0 0.0
        %394 = vmatprep.subr.mxu0 0.0
        %395 = vmatpush1.msra.mxu0 0.0
        %396 = vmatprep.subr.mxu0 0.0
        %397 = vmatpush1.msra.mxu0 0.0
        %398 = vmatprep.subr.mxu0 0.0
        %399 = vmatpush1.msra.mxu0 0.0
        %400 = vmatprep.subr.mxu0 0.0
        %401 = vmatpush1.msra.mxu0 0.0
        %402 = vmatprep.subr.mxu0 0.0
        %403 = vmatpush1.msra.mxu0 0.0
        %404 = vmatprep.subr.mxu0 0.0
        %405 = vmatpush1.msra.mxu0 0.0
        %406 = vmatprep.subr.mxu0 0.0
        %407 = vmatpush1.msra.mxu0 0.0
        %408 = vmatprep.subr.mxu0 0.0
        %409 = vmatpush1.msra.mxu0 0.0
        %410 = vmatprep.subr.mxu0 0.0
        %411 = vmatpush1.msra.mxu0 0.0
        %412 = vmatprep.subr.mxu0 0.0
        %413 = vmatpush1.msra.mxu0 0.0
        %414 = vmatprep.subr.mxu0 0.0
        %415 = vmatpush1.msra.mxu0 0.0
        %416 = vmatprep.subr.mxu0 0.0
        %417 = vmatpush1.msra.mxu0 0.0
        %418 = vmatprep.subr.mxu0 0.0
        %419 = vmatpush1.msra.mxu0 0.0
        %420 = vmatprep.subr.mxu0 0.0
        %421 = vmatpush1.msra.mxu0 0.0
        %422 = vmatprep.subr.mxu0 0.0
        %423 = vmatpush1.msra.mxu0 0.0
        %424 = vmatprep.subr.mxu0 0.0
        %425 = vmatpush1.msra.mxu0 0.0
        %426 = vmatprep.subr.mxu0 0.0
        %427 = vmatpush1.msra.mxu0 0.0
        %428 = vmatprep.subr.mxu0 0.0
        %429 = vmatpush1.msra.mxu0 0.0
        %430 = vmatprep.subr.mxu0 0.0
        %431 = vmatpush1.msra.mxu0 0.0
        %432 = vmatprep.subr.mxu0 0.0
        %433 = vmatpush1.msra.mxu0 0.0
        %434 = vmatprep.subr.mxu0 0.0
        %435 = vmatpush1.msra.mxu0 0.0
        %436 = vmatprep.subr.mxu0 0.0
        %437 = vmatpush1.msra.mxu0 0.0
        %438 = vmatprep.subr.mxu0 0.0
        %439 = vmatpush1.msra.mxu0 0.0
        %440 = vmatprep.subr.mxu0 0.0
        %441 = vmatpush1.msra.mxu0 0.0
        %442 = vmatprep.subr.mxu0 0.0
        %443 = vmatpush1.msra.mxu0 0.0
        %444 = vmatprep.subr.mxu0 0.0
        %445 = vmatpush1.msra.mxu0 0.0
        %446 = vmatprep.mubr.f32.mxu0 0.0
        %447 = vmatmul.mubr.f32.gmra.mrb[0].mxu0 %v380
        %v448 = vpop.f32.mrb[0].mxu0
        %v449 = vadd.f32 %v376, %v448
        %v450 = vpop.f32.mrb[0].mxu0
        %451 = vdwg.mxu0
        %452 = vst [vmem:[#allocation2] sm:$0xff] %v449
        %vm453 = vcmp.ge.f32.partialorder %v372, 0.0
        %v454 = vmul.f32 %v372, 0.2
        %v455 = vsel %vm453, %v372, %v454
        %456 = vadd.xlane.f32.xlu0 %v455
        %v457 = vpop.xlane.xlu0 %456
        %v458 = vmul.f32 %v457, 0.0078125
        %v459 = vmul.f32 %v455, %v455
        %460 = vadd.xlane.f32.xlu0 %v459
        %v461 = vpop.xlane.xlu0 %460
        %v462 = vmul.f32 %v461, 0.0078125
        %v463 = vmul.f32 %v458, %v458
        %v464 = vsub.f32 %v462, %v463
        %v465 = vmax.f32 %v464, 0.0
        %v466 = vsub.f32 %v455, %v458
        %v467 = vadd.f32 %v465, 1e-05
        %v468 = vrsqrt.pop %v467
        %v469 = vmul.f32 %v466, %v468
        %471 = vset.pattern.permute.xlu0 0
        %472 = vperm.xlu0 %471, %v345
        %v473 = vpop.permute.xlu0 %472
        %v475 = vmul.f32 %v473, %v469
        %477 = vset.pattern.permute.xlu0 0
        %478 = vperm.xlu0 %477, %v346
        %v479 = vpop.permute.xlu0 %478
        %v481 = vadd.f32 %v475, %v479
        %482 = vrot.lane.b32.xlu0 %v481, 1
        %v483 = vpop.permute.xlu0 %482
        %v484 = vsel %vm340, %v483, 0.0
        %485 = vrot.lane.b32.xlu0 %v481, 127
        %v486 = vpop.permute.xlu0 %485
        %v487 = vsel %vm341, %v486, 0.0
        %489 = vset.pattern.permute.xlu0 0
        %490 = vperm.xlu0 %489, %v335
        %v491 = vpop.permute.xlu0 %490
        %vm493 = vcmask 195584
        %v495 = vsel %vm493, %v334, 0
        %497 = vmatprep.subr.mxu0 0.0
        %498 = vmatpush1.msra.mxu0 %v484
        %499 = vmatprep.subr.mxu0 0.0
        %500 = vmatpush1.msra.mxu0 %v481
        %501 = vmatprep.subr.mxu0 0.0
        %502 = vmatpush1.msra.mxu0 %v487
        %503 = vmatprep.subr.mxu0 0.0
        %504 = vmatpush1.msra.mxu0 0.0
        %505 = vmatprep.subr.mxu0 0.0
        %506 = vmatpush1.msra.mxu0 0.0
        %507 = vmatprep.subr.mxu0 0.0
        %508 = vmatpush1.msra.mxu0 0.0
        %509 = vmatprep.subr.mxu0 0.0
        %510 = vmatpush1.msra.mxu0 0.0
        %511 = vmatprep.subr.mxu0 0.0
        %512 = vmatpush1.msra.mxu0 0.0
        %513 = vmatprep.subr.mxu0 0.0
        %514 = vmatpush1.msra.mxu0 0.0
        %515 = vmatprep.subr.mxu0 0.0
        %516 = vmatpush1.msra.mxu0 0.0
        %517 = vmatprep.subr.mxu0 0.0
        %518 = vmatpush1.msra.mxu0 0.0
        %519 = vmatprep.subr.mxu0 0.0
        %520 = vmatpush1.msra.mxu0 0.0
        %521 = vmatprep.subr.mxu0 0.0
        %522 = vmatpush1.msra.mxu0 0.0
        %523 = vmatprep.subr.mxu0 0.0
        %524 = vmatpush1.msra.mxu0 0.0
        %525 = vmatprep.subr.mxu0 0.0
        %526 = vmatpush1.msra.mxu0 0.0
        %527 = vmatprep.subr.mxu0 0.0
        %528 = vmatpush1.msra.mxu0 0.0
        %529 = vmatprep.subr.mxu0 0.0
        %530 = vmatpush1.msra.mxu0 0.0
        %531 = vmatprep.subr.mxu0 0.0
        %532 = vmatpush1.msra.mxu0 0.0
        %533 = vmatprep.subr.mxu0 0.0
        %534 = vmatpush1.msra.mxu0 0.0
        %535 = vmatprep.subr.mxu0 0.0
        %536 = vmatpush1.msra.mxu0 0.0
        %537 = vmatprep.subr.mxu0 0.0
        %538 = vmatpush1.msra.mxu0 0.0
        %539 = vmatprep.subr.mxu0 0.0
        %540 = vmatpush1.msra.mxu0 0.0
        %541 = vmatprep.subr.mxu0 0.0
        %542 = vmatpush1.msra.mxu0 0.0
        %543 = vmatprep.subr.mxu0 0.0
        %544 = vmatpush1.msra.mxu0 0.0
        %545 = vmatprep.subr.mxu0 0.0
        %546 = vmatpush1.msra.mxu0 0.0
        %547 = vmatprep.subr.mxu0 0.0
        %548 = vmatpush1.msra.mxu0 0.0
        %549 = vmatprep.subr.mxu0 0.0
        %550 = vmatpush1.msra.mxu0 0.0
        %551 = vmatprep.subr.mxu0 0.0
        %552 = vmatpush1.msra.mxu0 0.0
        %553 = vmatprep.subr.mxu0 0.0
        %554 = vmatpush1.msra.mxu0 0.0
        %555 = vmatprep.subr.mxu0 0.0
        %556 = vmatpush1.msra.mxu0 0.0
        %557 = vmatprep.subr.mxu0 0.0
        %558 = vmatpush1.msra.mxu0 0.0
        %559 = vmatprep.subr.mxu0 0.0
        %560 = vmatpush1.msra.mxu0 0.0
        %561 = vmatprep.mubr.f32.mxu0 0.0
        %562 = vmatmul.mubr.f32.gmra.mrb[0].mxu0 %v495
        %v563 = vpop.f32.mrb[0].mxu0
        %v564 = vadd.f32 %v491, %v563
        %v565 = vpop.f32.mrb[0].mxu0
        %566 = vdwg.mxu0
        %vm567 = vcmp.ge.f32.partialorder %v564, 0.0
        %v568 = vmul.f32 %v564, 0.2
        %v569 = vsel %vm567, %v564, %v568
        %570 = vrot.lane.b32.xlu0 %v569, 1
        %v571 = vpop.permute.xlu0 %570
        %v572 = vsel %vm340, %v571, 0.0
        %573 = vrot.lane.b32.xlu0 %v569, 127
        %v574 = vpop.permute.xlu0 %573
        %v575 = vsel %vm341, %v574, 0.0
        %577 = vset.pattern.permute.xlu0 0
        %578 = vperm.xlu0 %577, %v337
        %v579 = vpop.permute.xlu0 %578
        %v582 = vsel %vm493, %v336, 0
        %584 = vmatprep.subr.mxu0 0.0
        %585 = vmatpush1.msra.mxu0 %v572
        %586 = vmatprep.subr.mxu0 0.0
        %587 = vmatpush1.msra.mxu0 %v569
        %588 = vmatprep.subr.mxu0 0.0
        %589 = vmatpush1.msra.mxu0 %v575
        %590 = vmatprep.subr.mxu0 0.0
        %591 = vmatpush1.msra.mxu0 0.0
        %592 = vmatprep.subr.mxu0 0.0
        %593 = vmatpush1.msra.mxu0 0.0
        %594 = vmatprep.subr.mxu0 0.0
        %595 = vmatpush1.msra.mxu0 0.0
        %596 = vmatprep.subr.mxu0 0.0
        %597 = vmatpush1.msra.mxu0 0.0
        %598 = vmatprep.subr.mxu0 0.0
        %599 = vmatpush1.msra.mxu0 0.0
        %600 = vmatprep.subr.mxu0 0.0
        %601 = vmatpush1.msra.mxu0 0.0
        %602 = vmatprep.subr.mxu0 0.0
        %603 = vmatpush1.msra.mxu0 0.0
        %604 = vmatprep.subr.mxu0 0.0
        %605 = vmatpush1.msra.mxu0 0.0
        %606 = vmatprep.subr.mxu0 0.0
        %607 = vmatpush1.msra.mxu0 0.0
        %608 = vmatprep.subr.mxu0 0.0
        %609 = vmatpush1.msra.mxu0 0.0
        %610 = vmatprep.subr.mxu0 0.0
        %611 = vmatpush1.msra.mxu0 0.0
        %612 = vmatprep.subr.mxu0 0.0
        %613 = vmatpush1.msra.mxu0 0.0
        %614 = vmatprep.subr.mxu0 0.0
        %615 = vmatpush1.msra.mxu0 0.0
        %616 = vmatprep.subr.mxu0 0.0
        %617 = vmatpush1.msra.mxu0 0.0
        %618 = vmatprep.subr.mxu0 0.0
        %619 = vmatpush1.msra.mxu0 0.0
        %620 = vmatprep.subr.mxu0 0.0
        %621 = vmatpush1.msra.mxu0 0.0
        %622 = vmatprep.subr.mxu0 0.0
        %623 = vmatpush1.msra.mxu0 0.0
        %624 = vmatprep.subr.mxu0 0.0
        %625 = vmatpush1.msra.mxu0 0.0
        %626 = vmatprep.subr.mxu0 0.0
        %627 = vmatpush1.msra.mxu0 0.0
        %628 = vmatprep.subr.mxu0 0.0
        %629 = vmatpush1.msra.mxu0 0.0
        %630 = vmatprep.subr.mxu0 0.0
        %631 = vmatpush1.msra.mxu0 0.0
        %632 = vmatprep.subr.mxu0 0.0
        %633 = vmatpush1.msra.mxu0 0.0
        %634 = vmatprep.subr.mxu0 0.0
        %635 = vmatpush1.msra.mxu0 0.0
        %636 = vmatprep.subr.mxu0 0.0
        %637 = vmatpush1.msra.mxu0 0.0
        %638 = vmatprep.subr.mxu0 0.0
        %639 = vmatpush1.msra.mxu0 0.0
        %640 = vmatprep.subr.mxu0 0.0
        %641 = vmatpush1.msra.mxu0 0.0
        %642 = vmatprep.subr.mxu0 0.0
        %643 = vmatpush1.msra.mxu0 0.0
        %644 = vmatprep.subr.mxu0 0.0
        %645 = vmatpush1.msra.mxu0 0.0
        %646 = vmatprep.subr.mxu0 0.0
        %647 = vmatpush1.msra.mxu0 0.0
        %648 = vmatprep.mubr.f32.mxu0 0.0
        %649 = vmatmul.mubr.f32.gmra.mrb[0].mxu0 %v582
        %v650 = vpop.f32.mrb[0].mxu0
        %v651 = vadd.f32 %v579, %v650
        %v652 = vpop.f32.mrb[0].mxu0
        %653 = vdwg.mxu0
        %v654 = vld [vmem:[#allocation2] sm:$0xff]
        %v655 = vadd.f32 %v651, %v654
        %656 = vst [vmem:[%s317] sm:$0xff] %v655
        %s657 = scalar_lea.vmem %s322, 8
        %v658 = vld [vmem:[%s657] sm:$0xff]
        %s659 = scalar_lea.vmem %s329, 32
        %v660 = vld [vmem:[%s659] sm:$0xff]
        %v661 = vld [vmem:[%s659 + $0x8] sm:$0xff]
        %v662 = vld [vmem:[%s659 + $0x10] sm:$0xff]
        %v663 = vld [vmem:[%s659 + $0x18] sm:$0xff]
        %664 = vadd.xlane.f32.xlu0 %v658
        %v665 = vpop.xlane.xlu0 %664
        %v666 = vmul.f32 %v665, 0.0078125
        %v667 = vmul.f32 %v658, %v658
        %668 = vadd.xlane.f32.xlu0 %v667
        %v669 = vpop.xlane.xlu0 %668
        %v670 = vmul.f32 %v669, 0.0078125
        %v671 = vmul.f32 %v666, %v666
        %v672 = vsub.f32 %v670, %v671
        %v673 = vmax.f32 %v672, 0.0
        %v674 = vsub.f32 %v658, %v666
        %v675 = vadd.f32 %v673, 1e-05
        %v676 = vrsqrt.pop %v675
        %v677 = vmul.f32 %v674, %v676
        %679 = vset.pattern.permute.xlu0 0
        %680 = vperm.xlu0 %679, %v660
        %v681 = vpop.permute.xlu0 %680
        %v683 = vmul.f32 %v681, %v677
        %685 = vset.pattern.permute.xlu0 0
        %686 = vperm.xlu0 %685, %v661
        %v687 = vpop.permute.xlu0 %686
        %v689 = vadd.f32 %v683, %v687
        %690 = vmatprep.subr.mxu0 0.0
        %691 = vmatpush1.msra.mxu0 %v689
        %692 = vmatprep.subr.mxu0 0.0
        %693 = vmatpush1.msra.mxu0 0.0
        %694 = vmatprep.subr.mxu0 0.0
        %695 = vmatpush1.msra.mxu0 0.0
        %696 = vmatprep.subr.mxu0 0.0
        %697 = vmatpush1.msra.mxu0 0.0
        %698 = vmatprep.subr.mxu0 0.0
        %699 = vmatpush1.msra.mxu0 0.0
        %700 = vmatprep.subr.mxu0 0.0
        %701 = vmatpush1.msra.mxu0 0.0
        %702 = vmatprep.subr.mxu0 0.0
        %703 = vmatpush1.msra.mxu0 0.0
        %704 = vmatprep.subr.mxu0 0.0
        %705 = vmatpush1.msra.mxu0 0.0
        %706 = vmatprep.subr.mxu0 0.0
        %707 = vmatpush1.msra.mxu0 0.0
        %708 = vmatprep.subr.mxu0 0.0
        %709 = vmatpush1.msra.mxu0 0.0
        %710 = vmatprep.subr.mxu0 0.0
        %711 = vmatpush1.msra.mxu0 0.0
        %712 = vmatprep.subr.mxu0 0.0
        %713 = vmatpush1.msra.mxu0 0.0
        %714 = vmatprep.subr.mxu0 0.0
        %715 = vmatpush1.msra.mxu0 0.0
        %716 = vmatprep.subr.mxu0 0.0
        %717 = vmatpush1.msra.mxu0 0.0
        %718 = vmatprep.subr.mxu0 0.0
        %719 = vmatpush1.msra.mxu0 0.0
        %720 = vmatprep.subr.mxu0 0.0
        %721 = vmatpush1.msra.mxu0 0.0
        %722 = vmatprep.subr.mxu0 0.0
        %723 = vmatpush1.msra.mxu0 0.0
        %724 = vmatprep.subr.mxu0 0.0
        %725 = vmatpush1.msra.mxu0 0.0
        %726 = vmatprep.subr.mxu0 0.0
        %727 = vmatpush1.msra.mxu0 0.0
        %728 = vmatprep.subr.mxu0 0.0
        %729 = vmatpush1.msra.mxu0 0.0
        %730 = vmatprep.subr.mxu0 0.0
        %731 = vmatpush1.msra.mxu0 0.0
        %732 = vmatprep.subr.mxu0 0.0
        %733 = vmatpush1.msra.mxu0 0.0
        %734 = vmatprep.subr.mxu0 0.0
        %735 = vmatpush1.msra.mxu0 0.0
        %736 = vmatprep.subr.mxu0 0.0
        %737 = vmatpush1.msra.mxu0 0.0
        %738 = vmatprep.subr.mxu0 0.0
        %739 = vmatpush1.msra.mxu0 0.0
        %740 = vmatprep.subr.mxu0 0.0
        %741 = vmatpush1.msra.mxu0 0.0
        %742 = vmatprep.subr.mxu0 0.0
        %743 = vmatpush1.msra.mxu0 0.0
        %744 = vmatprep.subr.mxu0 0.0
        %745 = vmatpush1.msra.mxu0 0.0
        %746 = vmatprep.subr.mxu0 0.0
        %747 = vmatpush1.msra.mxu0 0.0
        %748 = vmatprep.subr.mxu0 0.0
        %749 = vmatpush1.msra.mxu0 0.0
        %750 = vmatprep.subr.mxu0 0.0
        %751 = vmatpush1.msra.mxu0 0.0
        %752 = vmatprep.subr.mxu0 0.0
        %753 = vmatpush1.msra.mxu0 0.0
        %754 = vmatprep.mubr.f32.mxu0 0.0
        %755 = vmatmul.mubr.f32.gmra.mrb[0].mxu0 %v380
        %v756 = vpop.f32.mrb[0].mxu0
        %v757 = vadd.f32 %v376, %v756
        %v758 = vpop.f32.mrb[0].mxu0
        %759 = vdwg.mxu0
        %760 = vst [vmem:[#allocation2] sm:$0xff] %v757
        %vm761 = vcmp.ge.f32.partialorder %v689, 0.0
        %v762 = vmul.f32 %v689, 0.2
        %v763 = vsel %vm761, %v689, %v762
        %764 = vadd.xlane.f32.xlu0 %v763
        %v765 = vpop.xlane.xlu0 %764
        %v766 = vmul.f32 %v765, 0.0078125
        %v767 = vmul.f32 %v763, %v763
        %768 = vadd.xlane.f32.xlu0 %v767
        %v769 = vpop.xlane.xlu0 %768
        %v770 = vmul.f32 %v769, 0.0078125
        %v771 = vmul.f32 %v766, %v766
        %v772 = vsub.f32 %v770, %v771
        %v773 = vmax.f32 %v772, 0.0
        %v774 = vsub.f32 %v763, %v766
        %v775 = vadd.f32 %v773, 1e-05
        %v776 = vrsqrt.pop %v775
        %v777 = vmul.f32 %v774, %v776
        %779 = vset.pattern.permute.xlu0 0
        %780 = vperm.xlu0 %779, %v662
        %v781 = vpop.permute.xlu0 %780
        %v783 = vmul.f32 %v781, %v777
        %785 = vset.pattern.permute.xlu0 0
        %786 = vperm.xlu0 %785, %v663
        %v787 = vpop.permute.xlu0 %786
        %v789 = vadd.f32 %v783, %v787
        %790 = vrot.lane.b32.xlu0 %v789, 1
        %v791 = vpop.permute.xlu0 %790
        %v792 = vsel %vm340, %v791, 0.0
        %793 = vrot.lane.b32.xlu0 %v789, 127
        %v794 = vpop.permute.xlu0 %793
        %v795 = vsel %vm341, %v794, 0.0
        %796 = vmatprep.subr.mxu0 0.0
        %797 = vmatpush1.msra.mxu0 %v792
        %798 = vmatprep.subr.mxu0 0.0
        %799 = vmatpush1.msra.mxu0 %v789
        %800 = vmatprep.subr.mxu0 0.0
        %801 = vmatpush1.msra.mxu0 %v795
        %802 = vmatprep.subr.mxu0 0.0
        %803 = vmatpush1.msra.mxu0 0.0
        %804 = vmatprep.subr.mxu0 0.0
        %805 = vmatpush1.msra.mxu0 0.0
        %806 = vmatprep.subr.mxu0 0.0
        %807 = vmatpush1.msra.mxu0 0.0
        %808 = vmatprep.subr.mxu0 0.0
        %809 = vmatpush1.msra.mxu0 0.0
        %810 = vmatprep.subr.mxu0 0.0
        %811 = vmatpush1.msra.mxu0 0.0
        %812 = vmatprep.subr.mxu0 0.0
        %813 = vmatpush1.msra.mxu0 0.0
        %814 = vmatprep.subr.mxu0 0.0
        %815 = vmatpush1.msra.mxu0 0.0
        %816 = vmatprep.subr.mxu0 0.0
        %817 = vmatpush1.msra.mxu0 0.0
        %818 = vmatprep.subr.mxu0 0.0
        %819 = vmatpush1.msra.mxu0 0.0
        %820 = vmatprep.subr.mxu0 0.0
        %821 = vmatpush1.msra.mxu0 0.0
        %822 = vmatprep.subr.mxu0 0.0
        %823 = vmatpush1.msra.mxu0 0.0
        %824 = vmatprep.subr.mxu0 0.0
        %825 = vmatpush1.msra.mxu0 0.0
        %826 = vmatprep.subr.mxu0 0.0
        %827 = vmatpush1.msra.mxu0 0.0
        %828 = vmatprep.subr.mxu0 0.0
        %829 = vmatpush1.msra.mxu0 0.0
        %830 = vmatprep.subr.mxu0 0.0
        %831 = vmatpush1.msra.mxu0 0.0
        %832 = vmatprep.subr.mxu0 0.0
        %833 = vmatpush1.msra.mxu0 0.0
        %834 = vmatprep.subr.mxu0 0.0
        %835 = vmatpush1.msra.mxu0 0.0
        %836 = vmatprep.subr.mxu0 0.0
        %837 = vmatpush1.msra.mxu0 0.0
        %838 = vmatprep.subr.mxu0 0.0
        %839 = vmatpush1.msra.mxu0 0.0
        %840 = vmatprep.subr.mxu0 0.0
        %841 = vmatpush1.msra.mxu0 0.0
        %842 = vmatprep.subr.mxu0 0.0
        %843 = vmatpush1.msra.mxu0 0.0
        %844 = vmatprep.subr.mxu0 0.0
        %845 = vmatpush1.msra.mxu0 0.0
        %846 = vmatprep.subr.mxu0 0.0
        %847 = vmatpush1.msra.mxu0 0.0
        %848 = vmatprep.subr.mxu0 0.0
        %849 = vmatpush1.msra.mxu0 0.0
        %850 = vmatprep.subr.mxu0 0.0
        %851 = vmatpush1.msra.mxu0 0.0
        %852 = vmatprep.subr.mxu0 0.0
        %853 = vmatpush1.msra.mxu0 0.0
        %854 = vmatprep.subr.mxu0 0.0
        %855 = vmatpush1.msra.mxu0 0.0
        %856 = vmatprep.subr.mxu0 0.0
        %857 = vmatpush1.msra.mxu0 0.0
        %858 = vmatprep.subr.mxu0 0.0
        %859 = vmatpush1.msra.mxu0 0.0
        %860 = vmatprep.mubr.f32.mxu0 0.0
        %861 = vmatmul.mubr.f32.gmra.mrb[0].mxu0 %v495
        %v862 = vpop.f32.mrb[0].mxu0
        %v863 = vadd.f32 %v491, %v862
        %v864 = vpop.f32.mrb[0].mxu0
        %865 = vdwg.mxu0
        %vm866 = vcmp.ge.f32.partialorder %v863, 0.0
        %v867 = vmul.f32 %v863, 0.2
        %v868 = vsel %vm866, %v863, %v867
        %869 = vrot.lane.b32.xlu0 %v868, 1
        %v870 = vpop.permute.xlu0 %869
        %v871 = vsel %vm340, %v870, 0.0
        %872 = vrot.lane.b32.xlu0 %v868, 127
        %v873 = vpop.permute.xlu0 %872
        %v874 = vsel %vm341, %v873, 0.0
        %875 = vmatprep.subr.mxu0 0.0
        %876 = vmatpush1.msra.mxu0 %v871
        %877 = vmatprep.subr.mxu0 0.0
        %878 = vmatpush1.msra.mxu0 %v868
        %879 = vmatprep.subr.mxu0 0.0
        %880 = vmatpush1.msra.mxu0 %v874
        %881 = vmatprep.subr.mxu0 0.0
        %882 = vmatpush1.msra.mxu0 0.0
        %883 = vmatprep.subr.mxu0 0.0
        %884 = vmatpush1.msra.mxu0 0.0
        %885 = vmatprep.subr.mxu0 0.0
        %886 = vmatpush1.msra.mxu0 0.0
        %887 = vmatprep.subr.mxu0 0.0
        %888 = vmatpush1.msra.mxu0 0.0
        %889 = vmatprep.subr.mxu0 0.0
        %890 = vmatpush1.msra.mxu0 0.0
        %891 = vmatprep.subr.mxu0 0.0
        %892 = vmatpush1.msra.mxu0 0.0
        %893 = vmatprep.subr.mxu0 0.0
        %894 = vmatpush1.msra.mxu0 0.0
        %895 = vmatprep.subr.mxu0 0.0
        %896 = vmatpush1.msra.mxu0 0.0
        %897 = vmatprep.subr.mxu0 0.0
        %898 = vmatpush1.msra.mxu0 0.0
        %899 = vmatprep.subr.mxu0 0.0
        %900 = vmatpush1.msra.mxu0 0.0
        %901 = vmatprep.subr.mxu0 0.0
        %902 = vmatpush1.msra.mxu0 0.0
        %903 = vmatprep.subr.mxu0 0.0
        %904 = vmatpush1.msra.mxu0 0.0
        %905 = vmatprep.subr.mxu0 0.0
        %906 = vmatpush1.msra.mxu0 0.0
        %907 = vmatprep.subr.mxu0 0.0
        %908 = vmatpush1.msra.mxu0 0.0
        %909 = vmatprep.subr.mxu0 0.0
        %910 = vmatpush1.msra.mxu0 0.0
        %911 = vmatprep.subr.mxu0 0.0
        %912 = vmatpush1.msra.mxu0 0.0
        %913 = vmatprep.subr.mxu0 0.0
        %914 = vmatpush1.msra.mxu0 0.0
        %915 = vmatprep.subr.mxu0 0.0
        %916 = vmatpush1.msra.mxu0 0.0
        %917 = vmatprep.subr.mxu0 0.0
        %918 = vmatpush1.msra.mxu0 0.0
        %919 = vmatprep.subr.mxu0 0.0
        %920 = vmatpush1.msra.mxu0 0.0
        %921 = vmatprep.subr.mxu0 0.0
        %922 = vmatpush1.msra.mxu0 0.0
        %923 = vmatprep.subr.mxu0 0.0
        %924 = vmatpush1.msra.mxu0 0.0
        %925 = vmatprep.subr.mxu0 0.0
        %926 = vmatpush1.msra.mxu0 0.0
        %927 = vmatprep.subr.mxu0 0.0
        %928 = vmatpush1.msra.mxu0 0.0
        %929 = vmatprep.subr.mxu0 0.0
        %930 = vmatpush1.msra.mxu0 0.0
        %931 = vmatprep.subr.mxu0 0.0
        %932 = vmatpush1.msra.mxu0 0.0
        %933 = vmatprep.subr.mxu0 0.0
        %934 = vmatpush1.msra.mxu0 0.0
        %935 = vmatprep.subr.mxu0 0.0
        %936 = vmatpush1.msra.mxu0 0.0
        %937 = vmatprep.subr.mxu0 0.0
        %938 = vmatpush1.msra.mxu0 0.0
        %939 = vmatprep.mubr.f32.mxu0 0.0
        %940 = vmatmul.mubr.f32.gmra.mrb[0].mxu0 %v582
        %v941 = vpop.f32.mrb[0].mxu0
        %v942 = vadd.f32 %v579, %v941
        %v943 = vpop.f32.mrb[0].mxu0
        %944 = vdwg.mxu0
        %v945 = vld [vmem:[#allocation2] sm:$0xff]
        %v946 = vadd.f32 %v942, %v945
        %s947 = scalar_lea.vmem %s317, 8 [#allocation3]
        %948 = vst [vmem:[%s947] sm:$0xff] %v946
        %s949 = sand.u32 %s208, 1
        %s950 = scalar_lea.sflag [#allocation4], %s949
        %s951 = sand.u32 %s208, 1
        %s952 = smul.addr %s951, 16
        %s953 = scalar_lea.vmem [#allocation3], %s952
        // Predicated region
        $region53: #{tpu_custom_call.1} parent=51 // pred_check
          %p954 = pneg %p218
        $region54: #{tpu_custom_call.1} parent=51 // pred_check_branch
          %956 = sbr.rel (%p954) target = $region56
        $region55: #{tpu_custom_call.1} parent=51 // pred_region
          %s957 = smul.u32 2, %s22
          %s959 = ssub.s32 256, 256
          %960 = vsyncadd %s950, %s959
          %s961 = smul.addr %s957, 128
          %s962 = scalar_lea.hbm %s8, %s961
          %s963 = sshll.u32 %s953, 4
          %s964 = int_to_ptr.vmem [resolvable:$true] %s963
          %969 = dma.vmem_to_hbm [thread:$0]  %s964, 256, %s962, %s950, 128, 128, 8
        $region56: #{tpu_custom_call.1} parent=51 // pred_fallthru
          _
      $region52: #{tpu_custom_call.1} parent=5 // pred_fallthru
        _
      %p970 = scmp.le.s32.totalorder 2, %s17
      // Predicated region
      $region57: #{tpu_custom_call.1} parent=5 // pred_check
        %p971 = pneg %p970
      $region58: #{tpu_custom_call.1} parent=5 // pred_check_branch
        %973 = sbr.rel (%p971) target = $region60
      $region59: #{tpu_custom_call.1} parent=5 // pred_region
        %s974 = ssub.s32 %s17, 2
        // Predicated region
        $region61: #{tpu_custom_call.1} parent=59 // pred_check
          %p975 = pneg %p224
        $region62: #{tpu_custom_call.1} parent=59 // pred_check_branch
          %977 = sbr.rel (%p975) target = $region64
        $region63: #{tpu_custom_call.1} parent=59 // pred_region
          %s978 = sand.u32 %s209, 1
          %s979 = scalar_lea.sflag [#allocation4], %s978
          %s980 = sand.u32 %s209, 1
          %s981 = smul.addr %s980, 16
          %s982 = scalar_lea.vmem [#allocation3], %s981
          %983 = dma.done %s979, 256
        $region64: #{tpu_custom_call.1} parent=59 // pred_fallthru
          _
      $region60: #{tpu_custom_call.1} parent=5 // pred_fallthru
        _
    $region6: #{tpu_custom_call.1} parent=1 // loop_footer
      %s21 = sadd.s32 1, %s17
    $region7: #{tpu_custom_call.1} parent=1 // loop_footer_branch
      %16 = sbr.rel target = $region3
    $region8: #{tpu_custom_call.1} parent=1 // loop_exit
      _
    %984 = vsyncpa [#allocation4], 1
    %s985 = scalar_lea.sflag [#allocation4], 1
    %986 = vsyncpa %s985, 1

</llo_original>
